<compile_context>
chip_gen: v7x
topology: tpu7x:2x2x1
jax: 0.10.0
libtpu: 0.0.40
codegen_flags: <defaults>
</compile_context>

<pallas_src>
import functools

import jax
import jax.numpy as jnp
from jax.experimental import pallas as pl
from jax.experimental.pallas import tpu as pltpu


def _dwsep_kernel(x_ref, dw_w_ref, pw_w_ref, scale_ref, shift_ref, o_ref,
                  xpad_ref, *, c1, c2, h, w, k):
    """One batch element: depthwise conv -> pointwise conv -> BN -> SiLU.

    x_ref:     (1, c1, h, w)          VMEM input block
    dw_w_ref:  (c1 * k * k,)          SMEM depthwise weights (per-chan scalars)
    pw_w_ref:  (c2 * c1,)             SMEM pointwise weights
    scale_ref: (c2,)                  SMEM folded BN scale
    shift_ref: (c2,)                  SMEM folded BN shift
    o_ref:     (1, c2, h, w)          VMEM output block
    xpad_ref:  (c1, h+2p, w+2p)       VMEM scratch (zero-padded input)
    """
    pad = k // 2

    # In-kernel zero padding: zero the scratch, then overwrite the interior.
    xpad_ref[...] = jnp.zeros_like(xpad_ref)
    xpad_ref[:, pad:pad + h, pad:pad + w] = x_ref[0].astype(jnp.float32)

    # ---- Depthwise k x k conv (stride 1, "same", groups == c1) -------------
    dw_out = []
    for c in range(c1):
        acc0 = jnp.zeros((h, w), jnp.float32)
        acc1 = jnp.zeros((h, w), jnp.float32)
        t = 0
        for dh in range(k):
            band = xpad_ref[c, dh:dh + h, :]              # (h, w + 2*pad)
            for dw in range(k):
                wv = dw_w_ref[c * k * k + dh * k + dw]    # SMEM scalar
                tap = wv * band[:, dw:dw + w]
                if t % 2 == 0:
                    acc0 = acc0 + tap
                else:
                    acc1 = acc1 + tap
                t += 1
        dw_out.append(acc0 + acc1)

    # ---- Pointwise 1x1 conv + folded BatchNorm + SiLU -----------------------
    for co in range(c2):
        acc0 = jnp.zeros((h, w), jnp.float32)
        acc1 = jnp.zeros((h, w), jnp.float32)
        for ci in range(c1):
            tap = pw_w_ref[co * c1 + ci] * dw_out[ci]
            if ci % 2 == 0:
                acc0 = acc0 + tap
            else:
                acc1 = acc1 + tap
        y = (acc0 + acc1) * scale_ref[co] + shift_ref[co]
        o_ref[0, co] = (y * jax.nn.sigmoid(y)).astype(o_ref.dtype)   # SiLU


def dwsep_forward(x, dw_w, pw_w, gamma, beta, mean, var, *, eps=1e-5):
    """x: (B, C1, H, W); dw_w: (C1, 1, k, k); pw_w: (C2, C1, 1, 1);
    gamma/beta/mean/var: (C2,) BatchNorm parameters (inference)."""
    b, c1, h, w = x.shape
    c2 = pw_w.shape[0]
    k = dw_w.shape[-1]
    pad = k // 2

    # Fold BatchNorm (inference) into per-channel scale/shift.
    scale = (gamma / jnp.sqrt(var + eps)).astype(jnp.float32)
    shift = (beta - mean * scale).astype(jnp.float32)

    kern = functools.partial(_dwsep_kernel, c1=c1, c2=c2, h=h, w=w, k=k)

    return pl.pallas_call(
        kern,
        out_shape=jax.ShapeDtypeStruct((b, c2, h, w), jnp.float32),
        grid=(b,),
        in_specs=[
            pl.BlockSpec((1, c1, h, w), lambda i: (i, 0, 0, 0)),
            pl.BlockSpec(memory_space=pltpu.MemorySpace.SMEM),  # depthwise w
            pl.BlockSpec(memory_space=pltpu.MemorySpace.SMEM),  # pointwise w
            pl.BlockSpec(memory_space=pltpu.MemorySpace.SMEM),  # BN scale
            pl.BlockSpec(memory_space=pltpu.MemorySpace.SMEM),  # BN shift
        ],
        out_specs=pl.BlockSpec((1, c2, h, w), lambda i: (i, 0, 0, 0)),
        scratch_shapes=[pltpu.VMEM((c1, h + 2 * pad, w + 2 * pad), jnp.float32)],
        compiler_params=pltpu.CompilerParams(dimension_semantics=("parallel",)),
    )(x,
      dw_w.reshape(-1).astype(jnp.float32),
      pw_w.reshape(-1).astype(jnp.float32),
      scale, shift)


def dwsep_reference(x, dw_w, pw_w, gamma, beta, mean, var, *, eps=1e-5):
    """Pure-JAX reference matching the PyTorch DepthwiseSeparableConv forward."""
    c1 = x.shape[1]
    k = dw_w.shape[-1]
    pad = k // 2
    y = jax.lax.conv_general_dilated(
        x, dw_w, window_strides=(1, 1), padding=((pad, pad), (pad, pad)),
        dimension_numbers=("NCHW", "OIHW", "NCHW"),
        feature_group_count=c1, precision=jax.lax.Precision.HIGHEST)
    y = jax.lax.conv_general_dilated(
        y, pw_w, window_strides=(1, 1), padding="VALID",
        dimension_numbers=("NCHW", "OIHW", "NCHW"),
        precision=jax.lax.Precision.HIGHEST)
    scale = gamma / jnp.sqrt(var + eps)
    shift = beta - mean * scale
    y = y * scale[None, :, None, None] + shift[None, :, None, None]
    return y * jax.nn.sigmoid(y)


if __name__ == "__main__":
    B, C1, C2, H, W, K = 2, 4, 8, 16, 16, 3

    key = jax.random.PRNGKey(0)
    kx, kdw, kpw, kg, kb, km, kv = jax.random.split(key, 7)
    x = jax.random.normal(kx, (B, C1, H, W), jnp.float32)
    # depthwise_conv: Conv2d(C1, C1, K, 1, K//2, groups=C1, bias=False)
    dw_w = 0.3 * jax.random.normal(kdw, (C1, 1, K, K), jnp.float32)
    # pointwise_conv: Conv2d(C1, C2, 1, 1, 0, bias=False)
    pw_w = 0.3 * jax.random.normal(kpw, (C2, C1, 1, 1), jnp.float32)
    # BatchNorm2d(C2) parameters (inference / running stats)
    gamma = 1.0 + 0.1 * jax.random.normal(kg, (C2,), jnp.float32)
    beta = 0.1 * jax.random.normal(kb, (C2,), jnp.float32)
    mean = 0.1 * jax.random.normal(km, (C2,), jnp.float32)
    var = 1.0 + 0.1 * jax.random.uniform(kv, (C2,), jnp.float32)

    out = jax.jit(dwsep_forward)(x, dw_w, pw_w, gamma, beta, mean, var)
    out = jax.block_until_ready(out)

    ref = dwsep_reference(x, dw_w, pw_w, gamma, beta, mean, var)
    err = float(jnp.max(jnp.abs(out - ref)))
    assert out.shape == (B, C2, H, W)
    assert jnp.allclose(out, ref, atol=1e-4, rtol=1e-4), f"max abs err {err}"

    print("KERNEL_OK")
</pallas_src>

<mosaic_0001>
module attributes {stable_mosaic.version = 11 : i64} {
  func.func @_dwsep_kernel(%arg0: i32, %arg1: memref<1x4x16x16xf32, #tpu.memory_space<vmem>>, %arg2: memref<36xf32, #tpu.memory_space<smem>>, %arg3: memref<32xf32, #tpu.memory_space<smem>>, %arg4: memref<8xf32, #tpu.memory_space<smem>>, %arg5: memref<8xf32, #tpu.memory_space<smem>>, %arg6: memref<1x8x16x16xf32, #tpu.memory_space<vmem>>, %arg7: memref<4x18x18xf32, #tpu.memory_space<vmem>>) attributes {dimension_semantics = [#tpu.dimension_semantics<parallel>], iteration_bounds = array<i64: 2>, scalar_prefetch = 0 : i64, scratch_operands = 1 : i64, tpu.core_type = #tpu.core_type<tc>, window_params = [{transform_indices = @transform_0, window_bounds = array<i64: 1, 4, 16, 16>}, {transform_indices = @transform_1, window_bounds = array<i64: 36>}, {transform_indices = @transform_2, window_bounds = array<i64: 32>}, {transform_indices = @transform_3, window_bounds = array<i64: 8>}, {transform_indices = @transform_4, window_bounds = array<i64: 8>}, {transform_indices = @transform_5, window_bounds = array<i64: 1, 8, 16, 16>}]} {
    %cst = arith.constant 0.000000e+00 : f32
    %0 = vector.broadcast %cst : f32 to vector<4x18x18xf32>
    %c0 = arith.constant 0 : index
    %c0_0 = arith.constant 0 : index
    %c0_1 = arith.constant 0 : index
    %1 = vector.load %arg7[%c0, %c0_0, %c0_1] : memref<4x18x18xf32, #tpu.memory_space<vmem>>, vector<4x18x18xf32>
    tpu.vector_store %arg7[%c0, %c0_0, %c0_1], %0 {strides = array<i32>} : memref<4x18x18xf32, #tpu.memory_space<vmem>>, vector<4x18x18xf32>,
    %c0_2 = arith.constant 0 : index
    %c0_3 = arith.constant 0 : index
    %c0_4 = arith.constant 0 : index
    %c0_5 = arith.constant 0 : index
    %2 = vector.load %arg1[%c0_2, %c0_3, %c0_4, %c0_5] : memref<1x4x16x16xf32, #tpu.memory_space<vmem>>, vector<1x4x16x16xf32>
    %3 = vector.shape_cast %2 : vector<1x4x16x16xf32> to vector<4x16x16xf32>
    %c0_6 = arith.constant 0 : index
    %c1 = arith.constant 1 : index
    %c1_7 = arith.constant 1 : index
    %4 = vector.load %arg7[%c0_6, %c1, %c1_7] : memref<4x18x18xf32, #tpu.memory_space<vmem>>, vector<4x16x16xf32>
    tpu.vector_store %arg7[%c0_6, %c1, %c1_7], %3 {strides = array<i32>} : memref<4x18x18xf32, #tpu.memory_space<vmem>>, vector<4x16x16xf32>,
    %cst_8 = arith.constant 0.000000e+00 : f32
    %5 = vector.broadcast %cst_8 : f32 to vector<16x16xf32>
    %cst_9 = arith.constant 0.000000e+00 : f32
    %6 = vector.broadcast %cst_9 : f32 to vector<16x16xf32>
    %c0_10 = arith.constant 0 : index
    %c0_11 = arith.constant 0 : index
    %c0_12 = arith.constant 0 : index
    %7 = vector.load %arg7[%c0_10, %c0_11, %c0_12] : memref<4x18x18xf32, #tpu.memory_space<vmem>>, vector<1x16x18xf32>
    %8 = vector.shape_cast %7 : vector<1x16x18xf32> to vector<16x18xf32>
    %c0_13 = arith.constant 0 : index
    %9 = memref.load %arg2[%c0_13] : memref<36xf32, #tpu.memory_space<smem>>
    %10 = vector.extract_strided_slice %8 {offsets = [0, 0], sizes = [16, 16], strides = [1, 1]} : vector<16x18xf32> to vector<16x16xf32>
    %11 = vector.broadcast %9 : f32 to vector<16x16xf32>
    %12 = arith.mulf %11, %10 : vector<16x16xf32>
    %13 = arith.addf %5, %12 : vector<16x16xf32>
    %c1_14 = arith.constant 1 : index
    %14 = memref.load %arg2[%c1_14] : memref<36xf32, #tpu.memory_space<smem>>
    %15 = vector.extract_strided_slice %8 {offsets = [0, 1], sizes = [16, 16], strides = [1, 1]} : vector<16x18xf32> to vector<16x16xf32>
    %16 = vector.broadcast %14 : f32 to vector<16x16xf32>
    %17 = arith.mulf %16, %15 : vector<16x16xf32>
    %18 = arith.addf %6, %17 : vector<16x16xf32>
    %c2 = arith.constant 2 : index
    %19 = memref.load %arg2[%c2] : memref<36xf32, #tpu.memory_space<smem>>
    %20 = vector.extract_strided_slice %8 {offsets = [0, 2], sizes = [16, 16], strides = [1, 1]} : vector<16x18xf32> to vector<16x16xf32>
    %21 = vector.broadcast %19 : f32 to vector<16x16xf32>
    %22 = arith.mulf %21, %20 : vector<16x16xf32>
    %23 = arith.addf %13, %22 : vector<16x16xf32>
    %c0_15 = arith.constant 0 : index
    %c1_16 = arith.constant 1 : index
    %c0_17 = arith.constant 0 : index
    %24 = vector.load %arg7[%c0_15, %c1_16, %c0_17] : memref<4x18x18xf32, #tpu.memory_space<vmem>>, vector<1x16x18xf32>
    %25 = vector.shape_cast %24 : vector<1x16x18xf32> to vector<16x18xf32>
    %c3 = arith.constant 3 : index
    %26 = memref.load %arg2[%c3] : memref<36xf32, #tpu.memory_space<smem>>
    %27 = vector.extract_strided_slice %25 {offsets = [0, 0], sizes = [16, 16], strides = [1, 1]} : vector<16x18xf32> to vector<16x16xf32>
    %28 = vector.broadcast %26 : f32 to vector<16x16xf32>
    %29 = arith.mulf %28, %27 : vector<16x16xf32>
    %30 = arith.addf %18, %29 : vector<16x16xf32>
    %c4 = arith.constant 4 : index
    %31 = memref.load %arg2[%c4] : memref<36xf32, #tpu.memory_space<smem>>
    %32 = vector.extract_strided_slice %25 {offsets = [0, 1], sizes = [16, 16], strides = [1, 1]} : vector<16x18xf32> to vector<16x16xf32>
    %33 = vector.broadcast %31 : f32 to vector<16x16xf32>
    %34 = arith.mulf %33, %32 : vector<16x16xf32>
    %35 = arith.addf %23, %34 : vector<16x16xf32>
    %c5 = arith.constant 5 : index
    %36 = memref.load %arg2[%c5] : memref<36xf32, #tpu.memory_space<smem>>
    %37 = vector.extract_strided_slice %25 {offsets = [0, 2], sizes = [16, 16], strides = [1, 1]} : vector<16x18xf32> to vector<16x16xf32>
    %38 = vector.broadcast %36 : f32 to vector<16x16xf32>
    %39 = arith.mulf %38, %37 : vector<16x16xf32>
    %40 = arith.addf %30, %39 : vector<16x16xf32>
    %c0_18 = arith.constant 0 : index
    %c2_19 = arith.constant 2 : index
    %c0_20 = arith.constant 0 : index
    %41 = vector.load %arg7[%c0_18, %c2_19, %c0_20] : memref<4x18x18xf32, #tpu.memory_space<vmem>>, vector<1x16x18xf32>
    %42 = vector.shape_cast %41 : vector<1x16x18xf32> to vector<16x18xf32>
    %c6 = arith.constant 6 : index
    %43 = memref.load %arg2[%c6] : memref<36xf32, #tpu.memory_space<smem>>
    %44 = vector.extract_strided_slice %42 {offsets = [0, 0], sizes = [16, 16], strides = [1, 1]} : vector<16x18xf32> to vector<16x16xf32>
    %45 = vector.broadcast %43 : f32 to vector<16x16xf32>
    %46 = arith.mulf %45, %44 : vector<16x16xf32>
    %47 = arith.addf %35, %46 : vector<16x16xf32>
    %c7 = arith.constant 7 : index
    %48 = memref.load %arg2[%c7] : memref<36xf32, #tpu.memory_space<smem>>
    %49 = vector.extract_strided_slice %42 {offsets = [0, 1], sizes = [16, 16], strides = [1, 1]} : vector<16x18xf32> to vector<16x16xf32>
    %50 = vector.broadcast %48 : f32 to vector<16x16xf32>
    %51 = arith.mulf %50, %49 : vector<16x16xf32>
    %52 = arith.addf %40, %51 : vector<16x16xf32>
    %c8 = arith.constant 8 : index
    %53 = memref.load %arg2[%c8] : memref<36xf32, #tpu.memory_space<smem>>
    %54 = vector.extract_strided_slice %42 {offsets = [0, 2], sizes = [16, 16], strides = [1, 1]} : vector<16x18xf32> to vector<16x16xf32>
    %55 = vector.broadcast %53 : f32 to vector<16x16xf32>
    %56 = arith.mulf %55, %54 : vector<16x16xf32>
    %57 = arith.addf %47, %56 : vector<16x16xf32>
    %58 = arith.addf %57, %52 : vector<16x16xf32>
    %cst_21 = arith.constant 0.000000e+00 : f32
    %59 = vector.broadcast %cst_21 : f32 to vector<16x16xf32>
    %cst_22 = arith.constant 0.000000e+00 : f32
    %60 = vector.broadcast %cst_22 : f32 to vector<16x16xf32>
    %c1_23 = arith.constant 1 : index
    %c0_24 = arith.constant 0 : index
    %c0_25 = arith.constant 0 : index
    %61 = vector.load %arg7[%c1_23, %c0_24, %c0_25] : memref<4x18x18xf32, #tpu.memory_space<vmem>>, vector<1x16x18xf32>
    %62 = vector.shape_cast %61 : vector<1x16x18xf32> to vector<16x18xf32>
    %c9 = arith.constant 9 : index
    %63 = memref.load %arg2[%c9] : memref<36xf32, #tpu.memory_space<smem>>
    %64 = vector.extract_strided_slice %62 {offsets = [0, 0], sizes = [16, 16], strides = [1, 1]} : vector<16x18xf32> to vector<16x16xf32>
    %65 = vector.broadcast %63 : f32 to vector<16x16xf32>
    %66 = arith.mulf %65, %64 : vector<16x16xf32>
    %67 = arith.addf %59, %66 : vector<16x16xf32>
    %c10 = arith.constant 10 : index
    %68 = memref.load %arg2[%c10] : memref<36xf32, #tpu.memory_space<smem>>
    %69 = vector.extract_strided_slice %62 {offsets = [0, 1], sizes = [16, 16], strides = [1, 1]} : vector<16x18xf32> to vector<16x16xf32>
    %70 = vector.broadcast %68 : f32 to vector<16x16xf32>
    %71 = arith.mulf %70, %69 : vector<16x16xf32>
    %72 = arith.addf %60, %71 : vector<16x16xf32>
    %c11 = arith.constant 11 : index
    %73 = memref.load %arg2[%c11] : memref<36xf32, #tpu.memory_space<smem>>
    %74 = vector.extract_strided_slice %62 {offsets = [0, 2], sizes = [16, 16], strides = [1, 1]} : vector<16x18xf32> to vector<16x16xf32>
    %75 = vector.broadcast %73 : f32 to vector<16x16xf32>
    %76 = arith.mulf %75, %74 : vector<16x16xf32>
    %77 = arith.addf %67, %76 : vector<16x16xf32>
    %c1_26 = arith.constant 1 : index
    %c1_27 = arith.constant 1 : index
    %c0_28 = arith.constant 0 : index
    %78 = vector.load %arg7[%c1_26, %c1_27, %c0_28] : memref<4x18x18xf32, #tpu.memory_space<vmem>>, vector<1x16x18xf32>
    %79 = vector.shape_cast %78 : vector<1x16x18xf32> to vector<16x18xf32>
    %c12 = arith.constant 12 : index
    %80 = memref.load %arg2[%c12] : memref<36xf32, #tpu.memory_space<smem>>
    %81 = vector.extract_strided_slice %79 {offsets = [0, 0], sizes = [16, 16], strides = [1, 1]} : vector<16x18xf32> to vector<16x16xf32>
    %82 = vector.broadcast %80 : f32 to vector<16x16xf32>
    %83 = arith.mulf %82, %81 : vector<16x16xf32>
    %84 = arith.addf %72, %83 : vector<16x16xf32>
    %c13 = arith.constant 13 : index
    %85 = memref.load %arg2[%c13] : memref<36xf32, #tpu.memory_space<smem>>
    %86 = vector.extract_strided_slice %79 {offsets = [0, 1], sizes = [16, 16], strides = [1, 1]} : vector<16x18xf32> to vector<16x16xf32>
    %87 = vector.broadcast %85 : f32 to vector<16x16xf32>
    %88 = arith.mulf %87, %86 : vector<16x16xf32>
    %89 = arith.addf %77, %88 : vector<16x16xf32>
    %c14 = arith.constant 14 : index
    %90 = memref.load %arg2[%c14] : memref<36xf32, #tpu.memory_space<smem>>
    %91 = vector.extract_strided_slice %79 {offsets = [0, 2], sizes = [16, 16], strides = [1, 1]} : vector<16x18xf32> to vector<16x16xf32>
    %92 = vector.broadcast %90 : f32 to vector<16x16xf32>
    %93 = arith.mulf %92, %91 : vector<16x16xf32>
    %94 = arith.addf %84, %93 : vector<16x16xf32>
    %c1_29 = arith.constant 1 : index
    %c2_30 = arith.constant 2 : index
    %c0_31 = arith.constant 0 : index
    %95 = vector.load %arg7[%c1_29, %c2_30, %c0_31] : memref<4x18x18xf32, #tpu.memory_space<vmem>>, vector<1x16x18xf32>
    %96 = vector.shape_cast %95 : vector<1x16x18xf32> to vector<16x18xf32>
    %c15 = arith.constant 15 : index
    %97 = memref.load %arg2[%c15] : memref<36xf32, #tpu.memory_space<smem>>
    %98 = vector.extract_strided_slice %96 {offsets = [0, 0], sizes = [16, 16], strides = [1, 1]} : vector<16x18xf32> to vector<16x16xf32>
    %99 = vector.broadcast %97 : f32 to vector<16x16xf32>
    %100 = arith.mulf %99, %98 : vector<16x16xf32>
    %101 = arith.addf %89, %100 : vector<16x16xf32>
    %c16 = arith.constant 16 : index
    %102 = memref.load %arg2[%c16] : memref<36xf32, #tpu.memory_space<smem>>
    %103 = vector.extract_strided_slice %96 {offsets = [0, 1], sizes = [16, 16], strides = [1, 1]} : vector<16x18xf32> to vector<16x16xf32>
    %104 = vector.broadcast %102 : f32 to vector<16x16xf32>
    %105 = arith.mulf %104, %103 : vector<16x16xf32>
    %106 = arith.addf %94, %105 : vector<16x16xf32>
    %c17 = arith.constant 17 : index
    %107 = memref.load %arg2[%c17] : memref<36xf32, #tpu.memory_space<smem>>
    %108 = vector.extract_strided_slice %96 {offsets = [0, 2], sizes = [16, 16], strides = [1, 1]} : vector<16x18xf32> to vector<16x16xf32>
    %109 = vector.broadcast %107 : f32 to vector<16x16xf32>
    %110 = arith.mulf %109, %108 : vector<16x16xf32>
    %111 = arith.addf %101, %110 : vector<16x16xf32>
    %112 = arith.addf %111, %106 : vector<16x16xf32>
    %cst_32 = arith.constant 0.000000e+00 : f32
    %113 = vector.broadcast %cst_32 : f32 to vector<16x16xf32>
    %cst_33 = arith.constant 0.000000e+00 : f32
    %114 = vector.broadcast %cst_33 : f32 to vector<16x16xf32>
    %c2_34 = arith.constant 2 : index
    %c0_35 = arith.constant 0 : index
    %c0_36 = arith.constant 0 : index
    %115 = vector.load %arg7[%c2_34, %c0_35, %c0_36] : memref<4x18x18xf32, #tpu.memory_space<vmem>>, vector<1x16x18xf32>
    %116 = vector.shape_cast %115 : vector<1x16x18xf32> to vector<16x18xf32>
    %c18 = arith.constant 18 : index
    %117 = memref.load %arg2[%c18] : memref<36xf32, #tpu.memory_space<smem>>
    %118 = vector.extract_strided_slice %116 {offsets = [0, 0], sizes = [16, 16], strides = [1, 1]} : vector<16x18xf32> to vector<16x16xf32>
    %119 = vector.broadcast %117 : f32 to vector<16x16xf32>
    %120 = arith.mulf %119, %118 : vector<16x16xf32>
    %121 = arith.addf %113, %120 : vector<16x16xf32>
    %c19 = arith.constant 19 : index
    %122 = memref.load %arg2[%c19] : memref<36xf32, #tpu.memory_space<smem>>
    %123 = vector.extract_strided_slice %116 {offsets = [0, 1], sizes = [16, 16], strides = [1, 1]} : vector<16x18xf32> to vector<16x16xf32>
    %124 = vector.broadcast %122 : f32 to vector<16x16xf32>
    %125 = arith.mulf %124, %123 : vector<16x16xf32>
    %126 = arith.addf %114, %125 : vector<16x16xf32>
    %c20 = arith.constant 20 : index
    %127 = memref.load %arg2[%c20] : memref<36xf32, #tpu.memory_space<smem>>
    %128 = vector.extract_strided_slice %116 {offsets = [0, 2], sizes = [16, 16], strides = [1, 1]} : vector<16x18xf32> to vector<16x16xf32>
    %129 = vector.broadcast %127 : f32 to vector<16x16xf32>
    %130 = arith.mulf %129, %128 : vector<16x16xf32>
    %131 = arith.addf %121, %130 : vector<16x16xf32>
    %c2_37 = arith.constant 2 : index
    %c1_38 = arith.constant 1 : index
    %c0_39 = arith.constant 0 : index
    %132 = vector.load %arg7[%c2_37, %c1_38, %c0_39] : memref<4x18x18xf32, #tpu.memory_space<vmem>>, vector<1x16x18xf32>
    %133 = vector.shape_cast %132 : vector<1x16x18xf32> to vector<16x18xf32>
    %c21 = arith.constant 21 : index
    %134 = memref.load %arg2[%c21] : memref<36xf32, #tpu.memory_space<smem>>
    %135 = vector.extract_strided_slice %133 {offsets = [0, 0], sizes = [16, 16], strides = [1, 1]} : vector<16x18xf32> to vector<16x16xf32>
    %136 = vector.broadcast %134 : f32 to vector<16x16xf32>
    %137 = arith.mulf %136, %135 : vector<16x16xf32>
    %138 = arith.addf %126, %137 : vector<16x16xf32>
    %c22 = arith.constant 22 : index
    %139 = memref.load %arg2[%c22] : memref<36xf32, #tpu.memory_space<smem>>
    %140 = vector.extract_strided_slice %133 {offsets = [0, 1], sizes = [16, 16], strides = [1, 1]} : vector<16x18xf32> to vector<16x16xf32>
    %141 = vector.broadcast %139 : f32 to vector<16x16xf32>
    %142 = arith.mulf %141, %140 : vector<16x16xf32>
    %143 = arith.addf %131, %142 : vector<16x16xf32>
    %c23 = arith.constant 23 : index
    %144 = memref.load %arg2[%c23] : memref<36xf32, #tpu.memory_space<smem>>
    %145 = vector.extract_strided_slice %133 {offsets = [0, 2], sizes = [16, 16], strides = [1, 1]} : vector<16x18xf32> to vector<16x16xf32>
    %146 = vector.broadcast %144 : f32 to vector<16x16xf32>
    %147 = arith.mulf %146, %145 : vector<16x16xf32>
    %148 = arith.addf %138, %147 : vector<16x16xf32>
    %c2_40 = arith.constant 2 : index
    %c2_41 = arith.constant 2 : index
    %c0_42 = arith.constant 0 : index
    %149 = vector.load %arg7[%c2_40, %c2_41, %c0_42] : memref<4x18x18xf32, #tpu.memory_space<vmem>>, vector<1x16x18xf32>
    %150 = vector.shape_cast %149 : vector<1x16x18xf32> to vector<16x18xf32>
    %c24 = arith.constant 24 : index
    %151 = memref.load %arg2[%c24] : memref<36xf32, #tpu.memory_space<smem>>
    %152 = vector.extract_strided_slice %150 {offsets = [0, 0], sizes = [16, 16], strides = [1, 1]} : vector<16x18xf32> to vector<16x16xf32>
    %153 = vector.broadcast %151 : f32 to vector<16x16xf32>
    %154 = arith.mulf %153, %152 : vector<16x16xf32>
    %155 = arith.addf %143, %154 : vector<16x16xf32>
    %c25 = arith.constant 25 : index
    %156 = memref.load %arg2[%c25] : memref<36xf32, #tpu.memory_space<smem>>
    %157 = vector.extract_strided_slice %150 {offsets = [0, 1], sizes = [16, 16], strides = [1, 1]} : vector<16x18xf32> to vector<16x16xf32>
    %158 = vector.broadcast %156 : f32 to vector<16x16xf32>
    %159 = arith.mulf %158, %157 : vector<16x16xf32>
    %160 = arith.addf %148, %159 : vector<16x16xf32>
    %c26 = arith.constant 26 : index
    %161 = memref.load %arg2[%c26] : memref<36xf32, #tpu.memory_space<smem>>
    %162 = vector.extract_strided_slice %150 {offsets = [0, 2], sizes = [16, 16], strides = [1, 1]} : vector<16x18xf32> to vector<16x16xf32>
    %163 = vector.broadcast %161 : f32 to vector<16x16xf32>
    %164 = arith.mulf %163, %162 : vector<16x16xf32>
    %165 = arith.addf %155, %164 : vector<16x16xf32>
    %166 = arith.addf %165, %160 : vector<16x16xf32>
    %cst_43 = arith.constant 0.000000e+00 : f32
    %167 = vector.broadcast %cst_43 : f32 to vector<16x16xf32>
    %cst_44 = arith.constant 0.000000e+00 : f32
    %168 = vector.broadcast %cst_44 : f32 to vector<16x16xf32>
    %c3_45 = arith.constant 3 : index
    %c0_46 = arith.constant 0 : index
    %c0_47 = arith.constant 0 : index
    %169 = vector.load %arg7[%c3_45, %c0_46, %c0_47] : memref<4x18x18xf32, #tpu.memory_space<vmem>>, vector<1x16x18xf32>
    %170 = vector.shape_cast %169 : vector<1x16x18xf32> to vector<16x18xf32>
    %c27 = arith.constant 27 : index
    %171 = memref.load %arg2[%c27] : memref<36xf32, #tpu.memory_space<smem>>
    %172 = vector.extract_strided_slice %170 {offsets = [0, 0], sizes = [16, 16], strides = [1, 1]} : vector<16x18xf32> to vector<16x16xf32>
    %173 = vector.broadcast %171 : f32 to vector<16x16xf32>
    %174 = arith.mulf %173, %172 : vector<16x16xf32>
    %175 = arith.addf %167, %174 : vector<16x16xf32>
    %c28 = arith.constant 28 : index
    %176 = memref.load %arg2[%c28] : memref<36xf32, #tpu.memory_space<smem>>
    %177 = vector.extract_strided_slice %170 {offsets = [0, 1], sizes = [16, 16], strides = [1, 1]} : vector<16x18xf32> to vector<16x16xf32>
    %178 = vector.broadcast %176 : f32 to vector<16x16xf32>
    %179 = arith.mulf %178, %177 : vector<16x16xf32>
    %180 = arith.addf %168, %179 : vector<16x16xf32>
    %c29 = arith.constant 29 : index
    %181 = memref.load %arg2[%c29] : memref<36xf32, #tpu.memory_space<smem>>
    %182 = vector.extract_strided_slice %170 {offsets = [0, 2], sizes = [16, 16], strides = [1, 1]} : vector<16x18xf32> to vector<16x16xf32>
    %183 = vector.broadcast %181 : f32 to vector<16x16xf32>
    %184 = arith.mulf %183, %182 : vector<16x16xf32>
    %185 = arith.addf %175, %184 : vector<16x16xf32>
    %c3_48 = arith.constant 3 : index
    %c1_49 = arith.constant 1 : index
    %c0_50 = arith.constant 0 : index
    %186 = vector.load %arg7[%c3_48, %c1_49, %c0_50] : memref<4x18x18xf32, #tpu.memory_space<vmem>>, vector<1x16x18xf32>
    %187 = vector.shape_cast %186 : vector<1x16x18xf32> to vector<16x18xf32>
    %c30 = arith.constant 30 : index
    %188 = memref.load %arg2[%c30] : memref<36xf32, #tpu.memory_space<smem>>
    %189 = vector.extract_strided_slice %187 {offsets = [0, 0], sizes = [16, 16], strides = [1, 1]} : vector<16x18xf32> to vector<16x16xf32>
    %190 = vector.broadcast %188 : f32 to vector<16x16xf32>
    %191 = arith.mulf %190, %189 : vector<16x16xf32>
    %192 = arith.addf %180, %191 : vector<16x16xf32>
    %c31 = arith.constant 31 : index
    %193 = memref.load %arg2[%c31] : memref<36xf32, #tpu.memory_space<smem>>
    %194 = vector.extract_strided_slice %187 {offsets = [0, 1], sizes = [16, 16], strides = [1, 1]} : vector<16x18xf32> to vector<16x16xf32>
    %195 = vector.broadcast %193 : f32 to vector<16x16xf32>
    %196 = arith.mulf %195, %194 : vector<16x16xf32>
    %197 = arith.addf %185, %196 : vector<16x16xf32>
    %c32 = arith.constant 32 : index
    %198 = memref.load %arg2[%c32] : memref<36xf32, #tpu.memory_space<smem>>
    %199 = vector.extract_strided_slice %187 {offsets = [0, 2], sizes = [16, 16], strides = [1, 1]} : vector<16x18xf32> to vector<16x16xf32>
    %200 = vector.broadcast %198 : f32 to vector<16x16xf32>
    %201 = arith.mulf %200, %199 : vector<16x16xf32>
    %202 = arith.addf %192, %201 : vector<16x16xf32>
    %c3_51 = arith.constant 3 : index
    %c2_52 = arith.constant 2 : index
    %c0_53 = arith.constant 0 : index
    %203 = vector.load %arg7[%c3_51, %c2_52, %c0_53] : memref<4x18x18xf32, #tpu.memory_space<vmem>>, vector<1x16x18xf32>
    %204 = vector.shape_cast %203 : vector<1x16x18xf32> to vector<16x18xf32>
    %c33 = arith.constant 33 : index
    %205 = memref.load %arg2[%c33] : memref<36xf32, #tpu.memory_space<smem>>
    %206 = vector.extract_strided_slice %204 {offsets = [0, 0], sizes = [16, 16], strides = [1, 1]} : vector<16x18xf32> to vector<16x16xf32>
    %207 = vector.broadcast %205 : f32 to vector<16x16xf32>
    %208 = arith.mulf %207, %206 : vector<16x16xf32>
    %209 = arith.addf %197, %208 : vector<16x16xf32>
    %c34 = arith.constant 34 : index
    %210 = memref.load %arg2[%c34] : memref<36xf32, #tpu.memory_space<smem>>
    %211 = vector.extract_strided_slice %204 {offsets = [0, 1], sizes = [16, 16], strides = [1, 1]} : vector<16x18xf32> to vector<16x16xf32>
    %212 = vector.broadcast %210 : f32 to vector<16x16xf32>
    %213 = arith.mulf %212, %211 : vector<16x16xf32>
    %214 = arith.addf %202, %213 : vector<16x16xf32>
    %c35 = arith.constant 35 : index
    %215 = memref.load %arg2[%c35] : memref<36xf32, #tpu.memory_space<smem>>
    %216 = vector.extract_strided_slice %204 {offsets = [0, 2], sizes = [16, 16], strides = [1, 1]} : vector<16x18xf32> to vector<16x16xf32>
    %217 = vector.broadcast %215 : f32 to vector<16x16xf32>
    %218 = arith.mulf %217, %216 : vector<16x16xf32>
    %219 = arith.addf %209, %218 : vector<16x16xf32>
    %220 = arith.addf %219, %214 : vector<16x16xf32>
    %cst_54 = arith.constant 0.000000e+00 : f32
    %221 = vector.broadcast %cst_54 : f32 to vector<16x16xf32>
    %cst_55 = arith.constant 0.000000e+00 : f32
    %222 = vector.broadcast %cst_55 : f32 to vector<16x16xf32>
    %c0_56 = arith.constant 0 : index
    %223 = memref.load %arg3[%c0_56] : memref<32xf32, #tpu.memory_space<smem>>
    %224 = vector.broadcast %223 : f32 to vector<16x16xf32>
    %225 = arith.mulf %224, %58 : vector<16x16xf32>
    %226 = arith.addf %221, %225 : vector<16x16xf32>
    %c1_57 = arith.constant 1 : index
    %227 = memref.load %arg3[%c1_57] : memref<32xf32, #tpu.memory_space<smem>>
    %228 = vector.broadcast %227 : f32 to vector<16x16xf32>
    %229 = arith.mulf %228, %112 : vector<16x16xf32>
    %230 = arith.addf %222, %229 : vector<16x16xf32>
    %c2_58 = arith.constant 2 : index
    %231 = memref.load %arg3[%c2_58] : memref<32xf32, #tpu.memory_space<smem>>
    %232 = vector.broadcast %231 : f32 to vector<16x16xf32>
    %233 = arith.mulf %232, %166 : vector<16x16xf32>
    %234 = arith.addf %226, %233 : vector<16x16xf32>
    %c3_59 = arith.constant 3 : index
    %235 = memref.load %arg3[%c3_59] : memref<32xf32, #tpu.memory_space<smem>>
    %236 = vector.broadcast %235 : f32 to vector<16x16xf32>
    %237 = arith.mulf %236, %220 : vector<16x16xf32>
    %238 = arith.addf %230, %237 : vector<16x16xf32>
    %239 = arith.addf %234, %238 : vector<16x16xf32>
    %c0_60 = arith.constant 0 : index
    %240 = memref.load %arg4[%c0_60] : memref<8xf32, #tpu.memory_space<smem>>
    %241 = vector.broadcast %240 : f32 to vector<16x16xf32>
    %242 = arith.mulf %239, %241 : vector<16x16xf32>
    %c0_61 = arith.constant 0 : index
    %243 = memref.load %arg5[%c0_61] : memref<8xf32, #tpu.memory_space<smem>>
    %244 = vector.broadcast %243 : f32 to vector<16x16xf32>
    %245 = arith.addf %242, %244 : vector<16x16xf32>
    %246 = arith.negf %245 : vector<16x16xf32>
    %247 = math.exp %246 : vector<16x16xf32>
    %cst_62 = arith.constant 1.000000e+00 : f32
    %248 = vector.broadcast %cst_62 : f32 to vector<16x16xf32>
    %249 = arith.addf %248, %247 : vector<16x16xf32>
    %250 = arith.divf %248, %249 : vector<16x16xf32>
    %251 = arith.mulf %245, %250 : vector<16x16xf32>
    %c0_63 = arith.constant 0 : index
    %c0_64 = arith.constant 0 : index
    %c0_65 = arith.constant 0 : index
    %c0_66 = arith.constant 0 : index
    %252 = vector.load %arg6[%c0_63, %c0_64, %c0_65, %c0_66] : memref<1x8x16x16xf32, #tpu.memory_space<vmem>>, vector<1x1x16x16xf32>
    %253 = vector.shape_cast %252 : vector<1x1x16x16xf32> to vector<16x16xf32>
    %254 = vector.shape_cast %251 : vector<16x16xf32> to vector<1x1x16x16xf32>
    tpu.vector_store %arg6[%c0_63, %c0_64, %c0_65, %c0_66], %254 {strides = array<i32>} : memref<1x8x16x16xf32, #tpu.memory_space<vmem>>, vector<1x1x16x16xf32>,
    %cst_67 = arith.constant 0.000000e+00 : f32
    %255 = vector.broadcast %cst_67 : f32 to vector<16x16xf32>
    %cst_68 = arith.constant 0.000000e+00 : f32
    %256 = vector.broadcast %cst_68 : f32 to vector<16x16xf32>
    %c4_69 = arith.constant 4 : index
    %257 = memref.load %arg3[%c4_69] : memref<32xf32, #tpu.memory_space<smem>>
    %258 = vector.broadcast %257 : f32 to vector<16x16xf32>
    %259 = arith.mulf %258, %58 : vector<16x16xf32>
    %260 = arith.addf %255, %259 : vector<16x16xf32>
    %c5_70 = arith.constant 5 : index
    %261 = memref.load %arg3[%c5_70] : memref<32xf32, #tpu.memory_space<smem>>
    %262 = vector.broadcast %261 : f32 to vector<16x16xf32>
    %263 = arith.mulf %262, %112 : vector<16x16xf32>
    %264 = arith.addf %256, %263 : vector<16x16xf32>
    %c6_71 = arith.constant 6 : index
    %265 = memref.load %arg3[%c6_71] : memref<32xf32, #tpu.memory_space<smem>>
    %266 = vector.broadcast %265 : f32 to vector<16x16xf32>
    %267 = arith.mulf %266, %166 : vector<16x16xf32>
    %268 = arith.addf %260, %267 : vector<16x16xf32>
    %c7_72 = arith.constant 7 : index
    %269 = memref.load %arg3[%c7_72] : memref<32xf32, #tpu.memory_space<smem>>
    %270 = vector.broadcast %269 : f32 to vector<16x16xf32>
    %271 = arith.mulf %270, %220 : vector<16x16xf32>
    %272 = arith.addf %264, %271 : vector<16x16xf32>
    %273 = arith.addf %268, %272 : vector<16x16xf32>
    %c1_73 = arith.constant 1 : index
    %274 = memref.load %arg4[%c1_73] : memref<8xf32, #tpu.memory_space<smem>>
    %275 = vector.broadcast %274 : f32 to vector<16x16xf32>
    %276 = arith.mulf %273, %275 : vector<16x16xf32>
    %c1_74 = arith.constant 1 : index
    %277 = memref.load %arg5[%c1_74] : memref<8xf32, #tpu.memory_space<smem>>
    %278 = vector.broadcast %277 : f32 to vector<16x16xf32>
    %279 = arith.addf %276, %278 : vector<16x16xf32>
    %280 = arith.negf %279 : vector<16x16xf32>
    %281 = math.exp %280 : vector<16x16xf32>
    %cst_75 = arith.constant 1.000000e+00 : f32
    %282 = vector.broadcast %cst_75 : f32 to vector<16x16xf32>
    %283 = arith.addf %282, %281 : vector<16x16xf32>
    %284 = arith.divf %282, %283 : vector<16x16xf32>
    %285 = arith.mulf %279, %284 : vector<16x16xf32>
    %c0_76 = arith.constant 0 : index
    %c1_77 = arith.constant 1 : index
    %c0_78 = arith.constant 0 : index
    %c0_79 = arith.constant 0 : index
    %286 = vector.load %arg6[%c0_76, %c1_77, %c0_78, %c0_79] : memref<1x8x16x16xf32, #tpu.memory_space<vmem>>, vector<1x1x16x16xf32>
    %287 = vector.shape_cast %286 : vector<1x1x16x16xf32> to vector<16x16xf32>
    %288 = vector.shape_cast %285 : vector<16x16xf32> to vector<1x1x16x16xf32>
    tpu.vector_store %arg6[%c0_76, %c1_77, %c0_78, %c0_79], %288 {strides = array<i32>} : memref<1x8x16x16xf32, #tpu.memory_space<vmem>>, vector<1x1x16x16xf32>,
    %cst_80 = arith.constant 0.000000e+00 : f32
    %289 = vector.broadcast %cst_80 : f32 to vector<16x16xf32>
    %cst_81 = arith.constant 0.000000e+00 : f32
    %290 = vector.broadcast %cst_81 : f32 to vector<16x16xf32>
    %c8_82 = arith.constant 8 : index
    %291 = memref.load %arg3[%c8_82] : memref<32xf32, #tpu.memory_space<smem>>
    %292 = vector.broadcast %291 : f32 to vector<16x16xf32>
    %293 = arith.mulf %292, %58 : vector<16x16xf32>
    %294 = arith.addf %289, %293 : vector<16x16xf32>
    %c9_83 = arith.constant 9 : index
    %295 = memref.load %arg3[%c9_83] : memref<32xf32, #tpu.memory_space<smem>>
    %296 = vector.broadcast %295 : f32 to vector<16x16xf32>
    %297 = arith.mulf %296, %112 : vector<16x16xf32>
    %298 = arith.addf %290, %297 : vector<16x16xf32>
    %c10_84 = arith.constant 10 : index
    %299 = memref.load %arg3[%c10_84] : memref<32xf32, #tpu.memory_space<smem>>
    %300 = vector.broadcast %299 : f32 to vector<16x16xf32>
    %301 = arith.mulf %300, %166 : vector<16x16xf32>
    %302 = arith.addf %294, %301 : vector<16x16xf32>
    %c11_85 = arith.constant 11 : index
    %303 = memref.load %arg3[%c11_85] : memref<32xf32, #tpu.memory_space<smem>>
    %304 = vector.broadcast %303 : f32 to vector<16x16xf32>
    %305 = arith.mulf %304, %220 : vector<16x16xf32>
    %306 = arith.addf %298, %305 : vector<16x16xf32>
    %307 = arith.addf %302, %306 : vector<16x16xf32>
    %c2_86 = arith.constant 2 : index
    %308 = memref.load %arg4[%c2_86] : memref<8xf32, #tpu.memory_space<smem>>
    %309 = vector.broadcast %308 : f32 to vector<16x16xf32>
    %310 = arith.mulf %307, %309 : vector<16x16xf32>
    %c2_87 = arith.constant 2 : index
    %311 = memref.load %arg5[%c2_87] : memref<8xf32, #tpu.memory_space<smem>>
    %312 = vector.broadcast %311 : f32 to vector<16x16xf32>
    %313 = arith.addf %310, %312 : vector<16x16xf32>
    %314 = arith.negf %313 : vector<16x16xf32>
    %315 = math.exp %314 : vector<16x16xf32>
    %cst_88 = arith.constant 1.000000e+00 : f32
    %316 = vector.broadcast %cst_88 : f32 to vector<16x16xf32>
    %317 = arith.addf %316, %315 : vector<16x16xf32>
    %318 = arith.divf %316, %317 : vector<16x16xf32>
    %319 = arith.mulf %313, %318 : vector<16x16xf32>
    %c0_89 = arith.constant 0 : index
    %c2_90 = arith.constant 2 : index
    %c0_91 = arith.constant 0 : index
    %c0_92 = arith.constant 0 : index
    %320 = vector.load %arg6[%c0_89, %c2_90, %c0_91, %c0_92] : memref<1x8x16x16xf32, #tpu.memory_space<vmem>>, vector<1x1x16x16xf32>
    %321 = vector.shape_cast %320 : vector<1x1x16x16xf32> to vector<16x16xf32>
    %322 = vector.shape_cast %319 : vector<16x16xf32> to vector<1x1x16x16xf32>
    tpu.vector_store %arg6[%c0_89, %c2_90, %c0_91, %c0_92], %322 {strides = array<i32>} : memref<1x8x16x16xf32, #tpu.memory_space<vmem>>, vector<1x1x16x16xf32>,
    %cst_93 = arith.constant 0.000000e+00 : f32
    %323 = vector.broadcast %cst_93 : f32 to vector<16x16xf32>
    %cst_94 = arith.constant 0.000000e+00 : f32
    %324 = vector.broadcast %cst_94 : f32 to vector<16x16xf32>
    %c12_95 = arith.constant 12 : index
    %325 = memref.load %arg3[%c12_95] : memref<32xf32, #tpu.memory_space<smem>>
    %326 = vector.broadcast %325 : f32 to vector<16x16xf32>
    %327 = arith.mulf %326, %58 : vector<16x16xf32>
    %328 = arith.addf %323, %327 : vector<16x16xf32>
    %c13_96 = arith.constant 13 : index
    %329 = memref.load %arg3[%c13_96] : memref<32xf32, #tpu.memory_space<smem>>
    %330 = vector.broadcast %329 : f32 to vector<16x16xf32>
    %331 = arith.mulf %330, %112 : vector<16x16xf32>
    %332 = arith.addf %324, %331 : vector<16x16xf32>
    %c14_97 = arith.constant 14 : index
    %333 = memref.load %arg3[%c14_97] : memref<32xf32, #tpu.memory_space<smem>>
    %334 = vector.broadcast %333 : f32 to vector<16x16xf32>
    %335 = arith.mulf %334, %166 : vector<16x16xf32>
    %336 = arith.addf %328, %335 : vector<16x16xf32>
    %c15_98 = arith.constant 15 : index
    %337 = memref.load %arg3[%c15_98] : memref<32xf32, #tpu.memory_space<smem>>
    %338 = vector.broadcast %337 : f32 to vector<16x16xf32>
    %339 = arith.mulf %338, %220 : vector<16x16xf32>
    %340 = arith.addf %332, %339 : vector<16x16xf32>
    %341 = arith.addf %336, %340 : vector<16x16xf32>
    %c3_99 = arith.constant 3 : index
    %342 = memref.load %arg4[%c3_99] : memref<8xf32, #tpu.memory_space<smem>>
    %343 = vector.broadcast %342 : f32 to vector<16x16xf32>
    %344 = arith.mulf %341, %343 : vector<16x16xf32>
    %c3_100 = arith.constant 3 : index
    %345 = memref.load %arg5[%c3_100] : memref<8xf32, #tpu.memory_space<smem>>
    %346 = vector.broadcast %345 : f32 to vector<16x16xf32>
    %347 = arith.addf %344, %346 : vector<16x16xf32>
    %348 = arith.negf %347 : vector<16x16xf32>
    %349 = math.exp %348 : vector<16x16xf32>
    %cst_101 = arith.constant 1.000000e+00 : f32
    %350 = vector.broadcast %cst_101 : f32 to vector<16x16xf32>
    %351 = arith.addf %350, %349 : vector<16x16xf32>
    %352 = arith.divf %350, %351 : vector<16x16xf32>
    %353 = arith.mulf %347, %352 : vector<16x16xf32>
    %c0_102 = arith.constant 0 : index
    %c3_103 = arith.constant 3 : index
    %c0_104 = arith.constant 0 : index
    %c0_105 = arith.constant 0 : index
    %354 = vector.load %arg6[%c0_102, %c3_103, %c0_104, %c0_105] : memref<1x8x16x16xf32, #tpu.memory_space<vmem>>, vector<1x1x16x16xf32>
    %355 = vector.shape_cast %354 : vector<1x1x16x16xf32> to vector<16x16xf32>
    %356 = vector.shape_cast %353 : vector<16x16xf32> to vector<1x1x16x16xf32>
    tpu.vector_store %arg6[%c0_102, %c3_103, %c0_104, %c0_105], %356 {strides = array<i32>} : memref<1x8x16x16xf32, #tpu.memory_space<vmem>>, vector<1x1x16x16xf32>,
    %cst_106 = arith.constant 0.000000e+00 : f32
    %357 = vector.broadcast %cst_106 : f32 to vector<16x16xf32>
    %cst_107 = arith.constant 0.000000e+00 : f32
    %358 = vector.broadcast %cst_107 : f32 to vector<16x16xf32>
    %c16_108 = arith.constant 16 : index
    %359 = memref.load %arg3[%c16_108] : memref<32xf32, #tpu.memory_space<smem>>
    %360 = vector.broadcast %359 : f32 to vector<16x16xf32>
    %361 = arith.mulf %360, %58 : vector<16x16xf32>
    %362 = arith.addf %357, %361 : vector<16x16xf32>
    %c17_109 = arith.constant 17 : index
    %363 = memref.load %arg3[%c17_109] : memref<32xf32, #tpu.memory_space<smem>>
    %364 = vector.broadcast %363 : f32 to vector<16x16xf32>
    %365 = arith.mulf %364, %112 : vector<16x16xf32>
    %366 = arith.addf %358, %365 : vector<16x16xf32>
    %c18_110 = arith.constant 18 : index
    %367 = memref.load %arg3[%c18_110] : memref<32xf32, #tpu.memory_space<smem>>
    %368 = vector.broadcast %367 : f32 to vector<16x16xf32>
    %369 = arith.mulf %368, %166 : vector<16x16xf32>
    %370 = arith.addf %362, %369 : vector<16x16xf32>
    %c19_111 = arith.constant 19 : index
    %371 = memref.load %arg3[%c19_111] : memref<32xf32, #tpu.memory_space<smem>>
    %372 = vector.broadcast %371 : f32 to vector<16x16xf32>
    %373 = arith.mulf %372, %220 : vector<16x16xf32>
    %374 = arith.addf %366, %373 : vector<16x16xf32>
    %375 = arith.addf %370, %374 : vector<16x16xf32>
    %c4_112 = arith.constant 4 : index
    %376 = memref.load %arg4[%c4_112] : memref<8xf32, #tpu.memory_space<smem>>
    %377 = vector.broadcast %376 : f32 to vector<16x16xf32>
    %378 = arith.mulf %375, %377 : vector<16x16xf32>
    %c4_113 = arith.constant 4 : index
    %379 = memref.load %arg5[%c4_113] : memref<8xf32, #tpu.memory_space<smem>>
    %380 = vector.broadcast %379 : f32 to vector<16x16xf32>
    %381 = arith.addf %378, %380 : vector<16x16xf32>
    %382 = arith.negf %381 : vector<16x16xf32>
    %383 = math.exp %382 : vector<16x16xf32>
    %cst_114 = arith.constant 1.000000e+00 : f32
    %384 = vector.broadcast %cst_114 : f32 to vector<16x16xf32>
    %385 = arith.addf %384, %383 : vector<16x16xf32>
    %386 = arith.divf %384, %385 : vector<16x16xf32>
    %387 = arith.mulf %381, %386 : vector<16x16xf32>
    %c0_115 = arith.constant 0 : index
    %c4_116 = arith.constant 4 : index
    %c0_117 = arith.constant 0 : index
    %c0_118 = arith.constant 0 : index
    %388 = vector.load %arg6[%c0_115, %c4_116, %c0_117, %c0_118] : memref<1x8x16x16xf32, #tpu.memory_space<vmem>>, vector<1x1x16x16xf32>
    %389 = vector.shape_cast %388 : vector<1x1x16x16xf32> to vector<16x16xf32>
    %390 = vector.shape_cast %387 : vector<16x16xf32> to vector<1x1x16x16xf32>
    tpu.vector_store %arg6[%c0_115, %c4_116, %c0_117, %c0_118], %390 {strides = array<i32>} : memref<1x8x16x16xf32, #tpu.memory_space<vmem>>, vector<1x1x16x16xf32>,
    %cst_119 = arith.constant 0.000000e+00 : f32
    %391 = vector.broadcast %cst_119 : f32 to vector<16x16xf32>
    %cst_120 = arith.constant 0.000000e+00 : f32
    %392 = vector.broadcast %cst_120 : f32 to vector<16x16xf32>
    %c20_121 = arith.constant 20 : index
    %393 = memref.load %arg3[%c20_121] : memref<32xf32, #tpu.memory_space<smem>>
    %394 = vector.broadcast %393 : f32 to vector<16x16xf32>
    %395 = arith.mulf %394, %58 : vector<16x16xf32>
    %396 = arith.addf %391, %395 : vector<16x16xf32>
    %c21_122 = arith.constant 21 : index
    %397 = memref.load %arg3[%c21_122] : memref<32xf32, #tpu.memory_space<smem>>
    %398 = vector.broadcast %397 : f32 to vector<16x16xf32>
    %399 = arith.mulf %398, %112 : vector<16x16xf32>
    %400 = arith.addf %392, %399 : vector<16x16xf32>
    %c22_123 = arith.constant 22 : index
    %401 = memref.load %arg3[%c22_123] : memref<32xf32, #tpu.memory_space<smem>>
    %402 = vector.broadcast %401 : f32 to vector<16x16xf32>
    %403 = arith.mulf %402, %166 : vector<16x16xf32>
    %404 = arith.addf %396, %403 : vector<16x16xf32>
    %c23_124 = arith.constant 23 : index
    %405 = memref.load %arg3[%c23_124] : memref<32xf32, #tpu.memory_space<smem>>
    %406 = vector.broadcast %405 : f32 to vector<16x16xf32>
    %407 = arith.mulf %406, %220 : vector<16x16xf32>
    %408 = arith.addf %400, %407 : vector<16x16xf32>
    %409 = arith.addf %404, %408 : vector<16x16xf32>
    %c5_125 = arith.constant 5 : index
    %410 = memref.load %arg4[%c5_125] : memref<8xf32, #tpu.memory_space<smem>>
    %411 = vector.broadcast %410 : f32 to vector<16x16xf32>
    %412 = arith.mulf %409, %411 : vector<16x16xf32>
    %c5_126 = arith.constant 5 : index
    %413 = memref.load %arg5[%c5_126] : memref<8xf32, #tpu.memory_space<smem>>
    %414 = vector.broadcast %413 : f32 to vector<16x16xf32>
    %415 = arith.addf %412, %414 : vector<16x16xf32>
    %416 = arith.negf %415 : vector<16x16xf32>
    %417 = math.exp %416 : vector<16x16xf32>
    %cst_127 = arith.constant 1.000000e+00 : f32
    %418 = vector.broadcast %cst_127 : f32 to vector<16x16xf32>
    %419 = arith.addf %418, %417 : vector<16x16xf32>
    %420 = arith.divf %418, %419 : vector<16x16xf32>
    %421 = arith.mulf %415, %420 : vector<16x16xf32>
    %c0_128 = arith.constant 0 : index
    %c5_129 = arith.constant 5 : index
    %c0_130 = arith.constant 0 : index
    %c0_131 = arith.constant 0 : index
    %422 = vector.load %arg6[%c0_128, %c5_129, %c0_130, %c0_131] : memref<1x8x16x16xf32, #tpu.memory_space<vmem>>, vector<1x1x16x16xf32>
    %423 = vector.shape_cast %422 : vector<1x1x16x16xf32> to vector<16x16xf32>
    %424 = vector.shape_cast %421 : vector<16x16xf32> to vector<1x1x16x16xf32>
    tpu.vector_store %arg6[%c0_128, %c5_129, %c0_130, %c0_131], %424 {strides = array<i32>} : memref<1x8x16x16xf32, #tpu.memory_space<vmem>>, vector<1x1x16x16xf32>,
    %cst_132 = arith.constant 0.000000e+00 : f32
    %425 = vector.broadcast %cst_132 : f32 to vector<16x16xf32>
    %cst_133 = arith.constant 0.000000e+00 : f32
    %426 = vector.broadcast %cst_133 : f32 to vector<16x16xf32>
    %c24_134 = arith.constant 24 : index
    %427 = memref.load %arg3[%c24_134] : memref<32xf32, #tpu.memory_space<smem>>
    %428 = vector.broadcast %427 : f32 to vector<16x16xf32>
    %429 = arith.mulf %428, %58 : vector<16x16xf32>
    %430 = arith.addf %425, %429 : vector<16x16xf32>
    %c25_135 = arith.constant 25 : index
    %431 = memref.load %arg3[%c25_135] : memref<32xf32, #tpu.memory_space<smem>>
    %432 = vector.broadcast %431 : f32 to vector<16x16xf32>
    %433 = arith.mulf %432, %112 : vector<16x16xf32>
    %434 = arith.addf %426, %433 : vector<16x16xf32>
    %c26_136 = arith.constant 26 : index
    %435 = memref.load %arg3[%c26_136] : memref<32xf32, #tpu.memory_space<smem>>
    %436 = vector.broadcast %435 : f32 to vector<16x16xf32>
    %437 = arith.mulf %436, %166 : vector<16x16xf32>
    %438 = arith.addf %430, %437 : vector<16x16xf32>
    %c27_137 = arith.constant 27 : index
    %439 = memref.load %arg3[%c27_137] : memref<32xf32, #tpu.memory_space<smem>>
    %440 = vector.broadcast %439 : f32 to vector<16x16xf32>
    %441 = arith.mulf %440, %220 : vector<16x16xf32>
    %442 = arith.addf %434, %441 : vector<16x16xf32>
    %443 = arith.addf %438, %442 : vector<16x16xf32>
    %c6_138 = arith.constant 6 : index
    %444 = memref.load %arg4[%c6_138] : memref<8xf32, #tpu.memory_space<smem>>
    %445 = vector.broadcast %444 : f32 to vector<16x16xf32>
    %446 = arith.mulf %443, %445 : vector<16x16xf32>
    %c6_139 = arith.constant 6 : index
    %447 = memref.load %arg5[%c6_139] : memref<8xf32, #tpu.memory_space<smem>>
    %448 = vector.broadcast %447 : f32 to vector<16x16xf32>
    %449 = arith.addf %446, %448 : vector<16x16xf32>
    %450 = arith.negf %449 : vector<16x16xf32>
    %451 = math.exp %450 : vector<16x16xf32>
    %cst_140 = arith.constant 1.000000e+00 : f32
    %452 = vector.broadcast %cst_140 : f32 to vector<16x16xf32>
    %453 = arith.addf %452, %451 : vector<16x16xf32>
    %454 = arith.divf %452, %453 : vector<16x16xf32>
    %455 = arith.mulf %449, %454 : vector<16x16xf32>
    %c0_141 = arith.constant 0 : index
    %c6_142 = arith.constant 6 : index
    %c0_143 = arith.constant 0 : index
    %c0_144 = arith.constant 0 : index
    %456 = vector.load %arg6[%c0_141, %c6_142, %c0_143, %c0_144] : memref<1x8x16x16xf32, #tpu.memory_space<vmem>>, vector<1x1x16x16xf32>
    %457 = vector.shape_cast %456 : vector<1x1x16x16xf32> to vector<16x16xf32>
    %458 = vector.shape_cast %455 : vector<16x16xf32> to vector<1x1x16x16xf32>
    tpu.vector_store %arg6[%c0_141, %c6_142, %c0_143, %c0_144], %458 {strides = array<i32>} : memref<1x8x16x16xf32, #tpu.memory_space<vmem>>, vector<1x1x16x16xf32>,
    %cst_145 = arith.constant 0.000000e+00 : f32
    %459 = vector.broadcast %cst_145 : f32 to vector<16x16xf32>
    %cst_146 = arith.constant 0.000000e+00 : f32
    %460 = vector.broadcast %cst_146 : f32 to vector<16x16xf32>
    %c28_147 = arith.constant 28 : index
    %461 = memref.load %arg3[%c28_147] : memref<32xf32, #tpu.memory_space<smem>>
    %462 = vector.broadcast %461 : f32 to vector<16x16xf32>
    %463 = arith.mulf %462, %58 : vector<16x16xf32>
    %464 = arith.addf %459, %463 : vector<16x16xf32>
    %c29_148 = arith.constant 29 : index
    %465 = memref.load %arg3[%c29_148] : memref<32xf32, #tpu.memory_space<smem>>
    %466 = vector.broadcast %465 : f32 to vector<16x16xf32>
    %467 = arith.mulf %466, %112 : vector<16x16xf32>
    %468 = arith.addf %460, %467 : vector<16x16xf32>
    %c30_149 = arith.constant 30 : index
    %469 = memref.load %arg3[%c30_149] : memref<32xf32, #tpu.memory_space<smem>>
    %470 = vector.broadcast %469 : f32 to vector<16x16xf32>
    %471 = arith.mulf %470, %166 : vector<16x16xf32>
    %472 = arith.addf %464, %471 : vector<16x16xf32>
    %c31_150 = arith.constant 31 : index
    %473 = memref.load %arg3[%c31_150] : memref<32xf32, #tpu.memory_space<smem>>
    %474 = vector.broadcast %473 : f32 to vector<16x16xf32>
    %475 = arith.mulf %474, %220 : vector<16x16xf32>
    %476 = arith.addf %468, %475 : vector<16x16xf32>
    %477 = arith.addf %472, %476 : vector<16x16xf32>
    %c7_151 = arith.constant 7 : index
    %478 = memref.load %arg4[%c7_151] : memref<8xf32, #tpu.memory_space<smem>>
    %479 = vector.broadcast %478 : f32 to vector<16x16xf32>
    %480 = arith.mulf %477, %479 : vector<16x16xf32>
    %c7_152 = arith.constant 7 : index
    %481 = memref.load %arg5[%c7_152] : memref<8xf32, #tpu.memory_space<smem>>
    %482 = vector.broadcast %481 : f32 to vector<16x16xf32>
    %483 = arith.addf %480, %482 : vector<16x16xf32>
    %484 = arith.negf %483 : vector<16x16xf32>
    %485 = math.exp %484 : vector<16x16xf32>
    %cst_153 = arith.constant 1.000000e+00 : f32
    %486 = vector.broadcast %cst_153 : f32 to vector<16x16xf32>
    %487 = arith.addf %486, %485 : vector<16x16xf32>
    %488 = arith.divf %486, %487 : vector<16x16xf32>
    %489 = arith.mulf %483, %488 : vector<16x16xf32>
    %c0_154 = arith.constant 0 : index
    %c7_155 = arith.constant 7 : index
    %c0_156 = arith.constant 0 : index
    %c0_157 = arith.constant 0 : index
    %490 = vector.load %arg6[%c0_154, %c7_155, %c0_156, %c0_157] : memref<1x8x16x16xf32, #tpu.memory_space<vmem>>, vector<1x1x16x16xf32>
    %491 = vector.shape_cast %490 : vector<1x1x16x16xf32> to vector<16x16xf32>
    %492 = vector.shape_cast %489 : vector<16x16xf32> to vector<1x1x16x16xf32>
    tpu.vector_store %arg6[%c0_154, %c7_155, %c0_156, %c0_157], %492 {strides = array<i32>} : memref<1x8x16x16xf32, #tpu.memory_space<vmem>>, vector<1x1x16x16xf32>,
    return
  }
  func.func @transform_0(%arg0: i32) -> (i32, i32, i32, i32) {
    %c0_i32 = arith.constant 0 : i32
    %c0_i32_0 = arith.constant 0 : i32
    %c0_i32_1 = arith.constant 0 : i32
    %c0_i32_2 = arith.constant 0 : i32
    return %arg0, %c0_i32, %c0_i32_0, %c0_i32_1 : i32, i32, i32, i32
  }
  func.func @transform_1(%arg0: i32) -> i32 {
    %c0_i32 = arith.constant 0 : i32
    %c0_i32_0 = arith.constant 0 : i32
    return %c0_i32 : i32
  }
  func.func @transform_2(%arg0: i32) -> i32 {
    %c0_i32 = arith.constant 0 : i32
    %c0_i32_0 = arith.constant 0 : i32
    return %c0_i32 : i32
  }
  func.func @transform_3(%arg0: i32) -> i32 {
    %c0_i32 = arith.constant 0 : i32
    %c0_i32_0 = arith.constant 0 : i32
    return %c0_i32 : i32
  }
  func.func @transform_4(%arg0: i32) -> i32 {
    %c0_i32 = arith.constant 0 : i32
    %c0_i32_0 = arith.constant 0 : i32
    return %c0_i32 : i32
  }
  func.func @transform_5(%arg0: i32) -> (i32, i32, i32, i32) {
    %c0_i32 = arith.constant 0 : i32
    %c0_i32_0 = arith.constant 0 : i32
    %c0_i32_1 = arith.constant 0 : i32
    %c0_i32_2 = arith.constant 0 : i32
    return %arg0, %c0_i32, %c0_i32_0, %c0_i32_1 : i32, i32, i32, i32
  }
}

</mosaic_0001>

<llo_original>
// kernel: dwsep_forward.1
$region0: #{dwsep_forward.1}
  #allocation0 [shape = 'u32[]', space=smem, size = 0x4, offset = 0x4, fixed_abs, tag = 'smem constant byte address 0x4 - core index']
  #allocation1 [shape = 'u32[144,128]{1,0:T(1,128)}', space=vmem, size = 0x12000, scoped, tag = 'internal scratch']
  #allocation2 [shape = 'f32[4,18,18]{2,1,0:T(8,128)}', space=vmem, size = 0xc000, scoped, tag = 'scratch operand']
  %s0 = inlined_call_operand.hbm [shape: f32[2,4,16,16], index: 0, kind: input, shape index: {}]
  %s1 = inlined_call_operand.vmem [shape: f32[36], index: 1, kind: input, shape index: {}]
  %s2 = inlined_call_operand.vmem [shape: f32[32], index: 2, kind: input, shape index: {}]
  %s3 = inlined_call_operand.vmem [shape: f32[8], index: 3, kind: input, shape index: {}]
  %s4 = inlined_call_operand.vmem [shape: f32[8], index: 4, kind: input, shape index: {}]
  %s5 = inlined_call_operand.hbm [shape: f32[2,8,16,16], index: 5, kind: output, shape index: {}]
  %s6 = sld [smem:[#allocation0]]
  $region73: #{dwsep_forward.1} parent=0
    _
  %s8 = ssub.s32 1, %s6
  %s9 = scalar_select 0, %s8, %s6
  $region1: #{dwsep_forward.1} parent=0
    #allocation3 [shape = 'u8[65536]{0}', space=vmem, size = 0x10000, scoped, tag = 'input window, operand 0']
    #allocation4 [shape = 's32[2]{0}', space=sflag, size = 0x8, scoped, tag = 'scoped memory for dwsep_forward.1']
    #allocation5 [shape = 's32[2]{0}', space=sflag, size = 0x8, scoped, tag = 'scoped memory for dwsep_forward.1']
    #allocation6 [shape = 's32[2]{0}', space=sflag, size = 0x8, scoped, tag = 'scoped memory for dwsep_forward.1']
    #allocation7 [shape = 'u8[512]{0}', space=smem, size = 0x200, scoped, tag = 'input window, operand 1, single buffered']
    #allocation8 [shape = 'u8[512]{0}', space=smem, size = 0x200, scoped, tag = 'input window, operand 2, single buffered']
    #allocation9 [shape = 's32[1]{0}', space=sflag, size = 0x4, scoped, tag = 'scoped memory for dwsep_forward.1']
    #allocation10 [shape = 'u8[512]{0}', space=smem, size = 0x200, scoped, tag = 'input window, operand 3, single buffered']
    #allocation11 [shape = 'u8[512]{0}', space=smem, size = 0x200, scoped, tag = 'input window, operand 4, single buffered']
    #allocation12 [shape = 's32[1]{0}', space=sflag, size = 0x4, scoped, tag = 'scoped memory for dwsep_forward.1']
    #allocation13 [shape = 'u8[131072]{0}', space=vmem, size = 0x20000, scoped, tag = 'output window, operand 0']
    %10 = vsyncpa [#allocation4], 0
    %s11 = scalar_lea.sflag [#allocation4], 1
    %12 = vsyncpa %s11, 0
    %13 = vsyncpa [#allocation6], 0
    %14 = vsyncpa [#allocation9], 0
    %15 = vsyncpa [#allocation12], 0
    %16 = vsyncpa [#allocation5], 0
    %s17 = scalar_lea.sflag [#allocation5], 1
    %18 = vsyncpa %s17, 0
    loop: start=0, step=1, limit=4
    $region2: #{dwsep_forward.1} parent=1 // loop_pre_header
      _
    $region3: #{dwsep_forward.1} parent=1 // loop_header
      %s20 = sphi 0, %s24
      %p21 = scmp.ge.s32.totalorder %s20, 4
      %s30 = sphi 0, %s32
      %s33 = sphi 0, %s30
      %s34 = sphi 0, %s33
      %s50 = sphi 0, %s34
      %s54 = sphi 0, %s54
      %s56 = sphi 0, %s54
      %s57 = sphi 0, %s56
      %s71 = sphi 0, %s57
      %s75 = sphi 0, %s75
      %s77 = sphi 0, %s75
      %s78 = sphi 0, %s77
      %s92 = sphi 0, %s78
      %s96 = sphi 0, %s96
      %s98 = sphi 0, %s96
      %s99 = sphi 0, %s98
      %s113 = sphi 0, %s99
      %s117 = sphi 0, %s117
      %s119 = sphi 0, %s117
      %s120 = sphi 0, %s119
      %s134 = sphi 0, %s120
      %s140 = sphi 0, %s142
      %s143 = sphi 0, %s140
      %s144 = sphi 0, %s143
      %s160 = sphi 0, %s144
    $region4: #{dwsep_forward.1} parent=1 // loop_header_branch
      %23 = sbr.rel (%p21) target = $region8
    $region5: #{dwsep_forward.1} parent=1 // loop_body
      %s25 = ssub.s32 %s20, 1
      %s26 = ssub.s32 %s20, 2
      %s27 = sadd.s32 %s20, 1
      %s28 = ssub.s32 %s20, %s27
      %p29 = scmp.eq.s32.totalorder %s28, 0
      %s31 = sadd.s32 %s30, 1
      %s32 = scalar_select %p29, %s30, %s31
      %p35 = pneg %p29
      %p36 = scmp.eq.s32.totalorder %s20, 1
      %p37 = por %p35, %p36
      %p38 = scmp.ne.s32.totalorder %s30, %s33
      %p39 = scmp.eq.s32.totalorder %s20, 0
      %p40 = por %p38, %p39
      %p41 = scmp.ne.s32.totalorder %s30, %s33
      %p42 = scmp.eq.s32.totalorder %s25, 1
      %p43 = por %p41, %p42
      %p44 = scmp.ne.s32.totalorder %s33, %s34
      %p45 = scmp.eq.s32.totalorder %s25, 0
      %p46 = por %p44, %p45
      %p47 = scmp.ne.s32.totalorder %s33, %s34
      %p48 = scmp.eq.s32.totalorder %s26, 1
      %p49 = por %p47, %p48
      %p51 = scmp.ne.s32.totalorder %s34, %s50
      %p52 = scmp.eq.s32.totalorder %s26, 0
      %p53 = por %p51, %p52
      %s55 = sadd.s32 %s54, 1
      %p58 = scmp.eq.s32.totalorder %s20, 1
      %p59 = scmp.ne.s32.totalorder %s54, %s56
      %p60 = scmp.eq.s32.totalorder %s20, 0
      %p61 = por %p59, %p60
      %p62 = scmp.ne.s32.totalorder %s54, %s56
      %p63 = scmp.eq.s32.totalorder %s25, 1
      %p64 = por %p62, %p63
      %p65 = scmp.ne.s32.totalorder %s56, %s57
      %p66 = scmp.eq.s32.totalorder %s25, 0
      %p67 = por %p65, %p66
      %p68 = scmp.ne.s32.totalorder %s56, %s57
      %p69 = scmp.eq.s32.totalorder %s26, 1
      %p70 = por %p68, %p69
      %p72 = scmp.ne.s32.totalorder %s57, %s71
      %p73 = scmp.eq.s32.totalorder %s26, 0
      %p74 = por %p72, %p73
      %s76 = sadd.s32 %s75, 1
      %p79 = scmp.eq.s32.totalorder %s20, 1
      %p80 = scmp.ne.s32.totalorder %s75, %s77
      %p81 = scmp.eq.s32.totalorder %s20, 0
      %p82 = por %p80, %p81
      %p83 = scmp.ne.s32.totalorder %s75, %s77
      %p84 = scmp.eq.s32.totalorder %s25, 1
      %p85 = por %p83, %p84
      %p86 = scmp.ne.s32.totalorder %s77, %s78
      %p87 = scmp.eq.s32.totalorder %s25, 0
      %p88 = por %p86, %p87
      %p89 = scmp.ne.s32.totalorder %s77, %s78
      %p90 = scmp.eq.s32.totalorder %s26, 1
      %p91 = por %p89, %p90
      %p93 = scmp.ne.s32.totalorder %s78, %s92
      %p94 = scmp.eq.s32.totalorder %s26, 0
      %p95 = por %p93, %p94
      %s97 = sadd.s32 %s96, 1
      %p100 = scmp.eq.s32.totalorder %s20, 1
      %p101 = scmp.ne.s32.totalorder %s96, %s98
      %p102 = scmp.eq.s32.totalorder %s20, 0
      %p103 = por %p101, %p102
      %p104 = scmp.ne.s32.totalorder %s96, %s98
      %p105 = scmp.eq.s32.totalorder %s25, 1
      %p106 = por %p104, %p105
      %p107 = scmp.ne.s32.totalorder %s98, %s99
      %p108 = scmp.eq.s32.totalorder %s25, 0
      %p109 = por %p107, %p108
      %p110 = scmp.ne.s32.totalorder %s98, %s99
      %p111 = scmp.eq.s32.totalorder %s26, 1
      %p112 = por %p110, %p111
      %p114 = scmp.ne.s32.totalorder %s99, %s113
      %p115 = scmp.eq.s32.totalorder %s26, 0
      %p116 = por %p114, %p115
      %s118 = sadd.s32 %s117, 1
      %p121 = scmp.eq.s32.totalorder %s20, 1
      %p122 = scmp.ne.s32.totalorder %s117, %s119
      %p123 = scmp.eq.s32.totalorder %s20, 0
      %p124 = por %p122, %p123
      %p125 = scmp.ne.s32.totalorder %s117, %s119
      %p126 = scmp.eq.s32.totalorder %s25, 1
      %p127 = por %p125, %p126
      %p128 = scmp.ne.s32.totalorder %s119, %s120
      %p129 = scmp.eq.s32.totalorder %s25, 0
      %p130 = por %p128, %p129
      %p131 = scmp.ne.s32.totalorder %s119, %s120
      %p132 = scmp.eq.s32.totalorder %s26, 1
      %p133 = por %p131, %p132
      %p135 = scmp.ne.s32.totalorder %s120, %s134
      %p136 = scmp.eq.s32.totalorder %s26, 0
      %p137 = por %p135, %p136
      %s138 = ssub.s32 %s20, %s27
      %p139 = scmp.eq.s32.totalorder %s138, 0
      %s141 = sadd.s32 %s140, 1
      %s142 = scalar_select %p139, %s140, %s141
      %p145 = pneg %p139
      %p146 = scmp.eq.s32.totalorder %s20, 1
      %p147 = por %p145, %p146
      %p148 = scmp.ne.s32.totalorder %s140, %s143
      %p149 = scmp.eq.s32.totalorder %s20, 0
      %p150 = por %p148, %p149
      %p151 = scmp.ne.s32.totalorder %s140, %s143
      %p152 = scmp.eq.s32.totalorder %s25, 1
      %p153 = por %p151, %p152
      %p154 = scmp.ne.s32.totalorder %s143, %s144
      %p155 = scmp.eq.s32.totalorder %s25, 0
      %p156 = por %p154, %p155
      %p157 = scmp.ne.s32.totalorder %s143, %s144
      %p158 = scmp.eq.s32.totalorder %s26, 1
      %p159 = por %p157, %p158
      %p161 = scmp.ne.s32.totalorder %s144, %s160
      %p162 = scmp.eq.s32.totalorder %s26, 0
      %p163 = por %p161, %p162
      %p164 = scmp.le.s32.totalorder 1, %s20
      %p165 = scmp.lt.s32.totalorder %s20, 3
      %p166 = pnand %p164, %p165
      %p167 = pneg %p166
      // Predicated region
      $region9: #{dwsep_forward.1} parent=5 // pred_check
        _
      $region10: #{dwsep_forward.1} parent=5 // pred_check_branch
        %169 = sbr.rel (%p166) target = $region12
      $region11: #{dwsep_forward.1} parent=5 // pred_region
        %s170 = ssub.s32 %s20, 1
        // Predicated region
        $region13: #{dwsep_forward.1} parent=11 // pred_check
          %p171 = pneg %p67
        $region14: #{dwsep_forward.1} parent=11 // pred_check_branch
          %173 = sbr.rel (%p171) target = $region16
        $region15: #{dwsep_forward.1} parent=11 // pred_region
          %s175 = ssub.s32 16, 16
          %176 = vsyncadd [#allocation6], %s175
          %s178 = sshll.u32 %s1, 4
          %s179 = int_to_ptr.vmem [resolvable:$true] %s178
          %181 = dma.vmem_to_smem %s179, 16, [#allocation7], [#allocation6]
        $region16: #{dwsep_forward.1} parent=11 // pred_fallthru
          _
        // Predicated region
        $region17: #{dwsep_forward.1} parent=11 // pred_check
          %p182 = pneg %p88
        $region18: #{dwsep_forward.1} parent=11 // pred_check_branch
          %184 = sbr.rel (%p182) target = $region20
        $region19: #{dwsep_forward.1} parent=11 // pred_region
          %s186 = ssub.s32 16, 16
          %187 = vsyncadd [#allocation9], %s186
          %s189 = sshll.u32 %s2, 4
          %s190 = int_to_ptr.vmem [resolvable:$true] %s189
          %192 = dma.vmem_to_smem %s190, 16, [#allocation8], [#allocation9]
        $region20: #{dwsep_forward.1} parent=11 // pred_fallthru
          _
        // Predicated region
        $region21: #{dwsep_forward.1} parent=11 // pred_check
          %p193 = pneg %p109
        $region22: #{dwsep_forward.1} parent=11 // pred_check_branch
          %195 = sbr.rel (%p193) target = $region24
        $region23: #{dwsep_forward.1} parent=11 // pred_region
          %s197 = ssub.s32 16, 16
          %198 = vsyncadd [#allocation9], %s197
          %s200 = sshll.u32 %s3, 4
          %s201 = int_to_ptr.vmem [resolvable:$true] %s200
          %203 = dma.vmem_to_smem %s201, 16, [#allocation10], [#allocation9]
        $region24: #{dwsep_forward.1} parent=11 // pred_fallthru
          _
        // Predicated region
        $region25: #{dwsep_forward.1} parent=11 // pred_check
          %p204 = pneg %p130
        $region26: #{dwsep_forward.1} parent=11 // pred_check_branch
          %206 = sbr.rel (%p204) target = $region28
        $region27: #{dwsep_forward.1} parent=11 // pred_region
          %s208 = ssub.s32 16, 16
          %209 = vsyncadd [#allocation12], %s208
          %s211 = sshll.u32 %s4, 4
          %s212 = int_to_ptr.vmem [resolvable:$true] %s211
          %214 = dma.vmem_to_smem %s212, 16, [#allocation11], [#allocation12]
        $region28: #{dwsep_forward.1} parent=11 // pred_fallthru
          _
      $region12: #{dwsep_forward.1} parent=5 // pred_fallthru
        _
      %p215 = scmp.lt.s32.totalorder %s20, 2
      // Predicated region
      $region29: #{dwsep_forward.1} parent=5 // pred_check
        %p216 = pneg %p215
      $region30: #{dwsep_forward.1} parent=5 // pred_check_branch
        %218 = sbr.rel (%p216) target = $region32
      $region31: #{dwsep_forward.1} parent=5 // pred_region
        // Predicated region
        $region33: #{dwsep_forward.1} parent=31 // pred_check
          %p219 = pneg %p40
        $region34: #{dwsep_forward.1} parent=31 // pred_check_branch
          %221 = sbr.rel (%p219) target = $region36
        $region35: #{dwsep_forward.1} parent=31 // pred_region
          %s222 = sand.u32 %s30, 1
          %s223 = scalar_lea.sflag [#allocation4], %s222
          %s224 = sand.u32 %s30, 1
          %s225 = smul.addr %s224, 64
          %s226 = scalar_lea.vmem [#allocation3], %s225
          %s228 = ssub.s32 1024, 1024
          %229 = vsyncadd %s223, %s228
          %s230 = smul.addr %s20, 8
          %s231 = smul.addr %s230, 128
          %s232 = scalar_lea.hbm %s0, %s231
          %s233 = sshll.u32 %s226, 4
          %s234 = int_to_ptr.vmem [resolvable:$true] %s233
          %239 = dma.hbm_to_vmem [thread:$0]  %s232, 1024, %s234, %s223, 128, 128, 8
        $region36: #{dwsep_forward.1} parent=31 // pred_fallthru
          _
      $region32: #{dwsep_forward.1} parent=5 // pred_fallthru
        _
      %p240 = scmp.le.s32.totalorder 1, %s20
      %p241 = scmp.lt.s32.totalorder %s20, 3
      %p242 = pnand %p240, %p241
      %p243 = pneg %p242
      // Predicated region
      $region37: #{dwsep_forward.1} parent=5 // pred_check
        _
      $region38: #{dwsep_forward.1} parent=5 // pred_check_branch
        %245 = sbr.rel (%p242) target = $region40
      $region39: #{dwsep_forward.1} parent=5 // pred_region
        %s246 = ssub.s32 %s20, 1
        %s247 = sand.u32 %s33, 1
        %s248 = scalar_lea.sflag [#allocation4], %s247
        %s249 = sand.u32 %s33, 1
        %s250 = smul.addr %s249, 64
        %s251 = scalar_lea.vmem [#allocation3], %s250
        // Predicated region
        $region41: #{dwsep_forward.1} parent=39 // pred_check
          %p252 = pneg %p46
        $region42: #{dwsep_forward.1} parent=39 // pred_check_branch
          %254 = sbr.rel (%p252) target = $region44
        $region43: #{dwsep_forward.1} parent=39 // pred_region
          %255 = dma.done %s248, 1024
        $region44: #{dwsep_forward.1} parent=39 // pred_fallthru
          _
        // Predicated region
        $region45: #{dwsep_forward.1} parent=39 // pred_check
          %p256 = pneg %p67
        $region46: #{dwsep_forward.1} parent=39 // pred_check_branch
          %258 = sbr.rel (%p256) target = $region48
        $region47: #{dwsep_forward.1} parent=39 // pred_region
          %259 = dma.done [#allocation6], 16
        $region48: #{dwsep_forward.1} parent=39 // pred_fallthru
          _
        // Predicated region
        $region49: #{dwsep_forward.1} parent=39 // pred_check
          %p260 = pneg %p88
        $region50: #{dwsep_forward.1} parent=39 // pred_check_branch
          %262 = sbr.rel (%p260) target = $region52
        $region51: #{dwsep_forward.1} parent=39 // pred_region
          %263 = dma.done [#allocation9], 16
        $region52: #{dwsep_forward.1} parent=39 // pred_fallthru
          _
        // Predicated region
        $region53: #{dwsep_forward.1} parent=39 // pred_check
          %p264 = pneg %p109
        $region54: #{dwsep_forward.1} parent=39 // pred_check_branch
          %266 = sbr.rel (%p264) target = $region56
        $region55: #{dwsep_forward.1} parent=39 // pred_region
          %267 = dma.done [#allocation9], 16
        $region56: #{dwsep_forward.1} parent=39 // pred_fallthru
          _
        // Predicated region
        $region57: #{dwsep_forward.1} parent=39 // pred_check
          %p268 = pneg %p130
        $region58: #{dwsep_forward.1} parent=39 // pred_check_branch
          %270 = sbr.rel (%p268) target = $region60
        $region59: #{dwsep_forward.1} parent=39 // pred_region
          %271 = dma.done [#allocation12], 16
        $region60: #{dwsep_forward.1} parent=39 // pred_fallthru
          _
        %272 = sfence
        %s273 = sand.u32 %s33, 1
        %s274 = scalar_lea.sflag [#allocation4], %s273
        %s275 = sand.u32 %s33, 1
        %s276 = smul.addr %s275, 64
        %s277 = scalar_lea.vmem [#allocation3], %s276
        %p278 = pneg %p46
        %p279 = pneg %p43
        %p280 = pneg %p67
        %p281 = pneg %p64
        %p282 = pneg %p88
        %p283 = pneg %p85
        %p284 = pneg %p109
        %p285 = pneg %p106
        %p286 = pneg %p130
        %p287 = pneg %p127
        %p288 = pneg %p156
        %p289 = pneg %p153
        %s290 = sand.u32 %s143, 1
        %s291 = scalar_lea.sflag [#allocation5], %s290
        %s292 = sand.u32 %s143, 1
        %s293 = smul.addr %s292, 128
        %s294 = scalar_lea.vmem [#allocation13], %s293
        %vm295 = vcmask 146432
        %296 = vst.msk [vmem:[#allocation2] sm:$0xff] %vm295, 0.0
        %297 = vst.msk [vmem:[#allocation2 + $0x8] sm:$0xff] %vm295, 0.0
        %vm298 = vcmask 140288
        %299 = vst.msk [vmem:[#allocation2 + $0x10] sm:$0x3] %vm298, 0.0
        %300 = vst.msk [vmem:[#allocation2 + $0x18] sm:$0xff] %vm295, 0.0
        %301 = vst.msk [vmem:[#allocation2 + $0x20] sm:$0xff] %vm295, 0.0
        %302 = vst.msk [vmem:[#allocation2 + $0x28] sm:$0x3] %vm298, 0.0
        %303 = vst.msk [vmem:[#allocation2 + $0x30] sm:$0xff] %vm295, 0.0
        %304 = vst.msk [vmem:[#allocation2 + $0x38] sm:$0xff] %vm295, 0.0
        %305 = vst.msk [vmem:[#allocation2 + $0x40] sm:$0x3] %vm298, 0.0
        %306 = vst.msk [vmem:[#allocation2 + $0x48] sm:$0xff] %vm295, 0.0
        %307 = vst.msk [vmem:[#allocation2 + $0x50] sm:$0xff] %vm295, 0.0
        %308 = vst.msk [vmem:[#allocation2 + $0x58] sm:$0x3] %vm298, 0.0
        %v309 = vld [vmem:[%s251] sm:$0xff]
        %v310 = vld [vmem:[%s251 + $0x8] sm:$0xff]
        %v311 = vld [vmem:[%s251 + $0x10] sm:$0xff]
        %v312 = vld [vmem:[%s251 + $0x18] sm:$0xff]
        %v313 = vld [vmem:[%s251 + $0x20] sm:$0xff]
        %v314 = vld [vmem:[%s251 + $0x28] sm:$0xff]
        %v315 = vld [vmem:[%s251 + $0x30] sm:$0xff]
        %v316 = vld [vmem:[%s251 + $0x38] sm:$0xff]
        %325 = vrot.lane.b32.xlu0 %v309, 1
        %v326 = vpop.permute.xlu0 %325
        %327 = vrot.lane.b32.xlu0 %v310, 1
        %v328 = vpop.permute.xlu0 %327
        %329 = vrot.lane.b32.xlu0 %v311, 1
        %v330 = vpop.permute.xlu0 %329
        %331 = vrot.lane.b32.xlu0 %v312, 1
        %v332 = vpop.permute.xlu0 %331
        %333 = vrot.lane.b32.xlu0 %v313, 1
        %v334 = vpop.permute.xlu0 %333
        %335 = vrot.lane.b32.xlu0 %v314, 1
        %v336 = vpop.permute.xlu0 %335
        %337 = vrot.lane.b32.xlu0 %v315, 1
        %v338 = vpop.permute.xlu0 %337
        %339 = vrot.lane.b32.xlu0 %v316, 1
        %v340 = vpop.permute.xlu0 %339
        %vm349 = vcmask 138248
        %350 = vst.msk [vmem:[#allocation2 + $0x1] sm:$0xff] %vm349, %v326
        %351 = vst.msk [vmem:[#allocation2 + $0x9] sm:$0xff] %vm349, %v328
        %352 = vst.msk [vmem:[#allocation2 + $0x19] sm:$0xff] %vm349, %v330
        %353 = vst.msk [vmem:[#allocation2 + $0x21] sm:$0xff] %vm349, %v332
        %354 = vst.msk [vmem:[#allocation2 + $0x31] sm:$0xff] %vm349, %v334
        %355 = vst.msk [vmem:[#allocation2 + $0x39] sm:$0xff] %vm349, %v336
        %356 = vst.msk [vmem:[#allocation2 + $0x49] sm:$0xff] %vm349, %v338
        %357 = vst.msk [vmem:[#allocation2 + $0x51] sm:$0xff] %vm349, %v340
        %v358 = vld [vmem:[#allocation2] sm:$0xff]
        %v359 = vld [vmem:[#allocation2 + $0x8] sm:$0xff]
        %s360 = sld [smem:[#allocation7]]
        %v361 = vstv %s360
        %v362 = vmul.f32 %v361, %v358
        %v363 = vmul.f32 %v361, %v359
        %v364 = vadd.f32 %v362, 0.0
        %v365 = vadd.f32 %v363, 0.0
        %s366 = sld [smem:[#allocation7 + $0x1]]
        %v367 = vstv %s366
        %v368 = vmul.f32 %v367, %v358
        %v369 = vmul.f32 %v367, %v359
        %v370 = vadd.f32 %v368, 0.0
        %v371 = vadd.f32 %v369, 0.0
        %s372 = sld [smem:[#allocation7 + $0x2]]
        %v373 = vstv %s372
        %v374 = vmul.f32 %v373, %v358
        %v375 = vmul.f32 %v373, %v359
        %378 = vrot.lane.b32.xlu0 %v374, 126
        %v379 = vpop.permute.xlu0 %378
        %380 = vrot.lane.b32.xlu0 %v375, 126
        %v381 = vpop.permute.xlu0 %380
        %v384 = vadd.f32 %v364, %v379
        %v385 = vadd.f32 %v365, %v381
        %v386 = vld [vmem:[#allocation2 + $0x1] sm:$0xff]
        %v387 = vld [vmem:[#allocation2 + $0x9] sm:$0xff]
        %s388 = sld [smem:[#allocation7 + $0x3]]
        %v389 = vstv %s388
        %v390 = vmul.f32 %v389, %v386
        %v391 = vmul.f32 %v389, %v387
        %394 = vrot.lane.b32.xlu0 %v390, 1
        %v395 = vpop.permute.xlu0 %394
        %396 = vrot.lane.b32.xlu0 %v391, 1
        %v397 = vpop.permute.xlu0 %396
        %v400 = vadd.f32 %v370, %v395
        %v401 = vadd.f32 %v371, %v397
        %s402 = sld [smem:[#allocation7 + $0x4]]
        %v403 = vstv %s402
        %v404 = vmul.f32 %v403, %v386
        %v405 = vmul.f32 %v403, %v387
        %408 = vrot.lane.b32.xlu0 %v404, 127
        %v409 = vpop.permute.xlu0 %408
        %410 = vrot.lane.b32.xlu0 %v405, 127
        %v411 = vpop.permute.xlu0 %410
        %v414 = vadd.f32 %v384, %v409
        %v415 = vadd.f32 %v385, %v411
        %s416 = sld [smem:[#allocation7 + $0x5]]
        %v417 = vstv %s416
        %v418 = vmul.f32 %v417, %v386
        %v419 = vmul.f32 %v417, %v387
        %422 = vrot.lane.b32.xlu0 %v418, 127
        %v423 = vpop.permute.xlu0 %422
        %424 = vrot.lane.b32.xlu0 %v419, 127
        %v425 = vpop.permute.xlu0 %424
        %v428 = vadd.f32 %v400, %v423
        %v429 = vadd.f32 %v401, %v425
        %v430 = vld [vmem:[#allocation2 + $0x2] sm:$0xff]
        %v431 = vld [vmem:[#allocation2 + $0xa] sm:$0xff]
        %s432 = sld [smem:[#allocation7 + $0x6]]
        %v433 = vstv %s432
        %v434 = vmul.f32 %v433, %v430
        %v435 = vmul.f32 %v433, %v431
        %v436 = vadd.f32 %v414, %v434
        %v437 = vadd.f32 %v415, %v435
        %s438 = sld [smem:[#allocation7 + $0x7]]
        %v439 = vstv %s438
        %v440 = vmul.f32 %v439, %v430
        %v441 = vmul.f32 %v439, %v431
        %v442 = vadd.f32 %v428, %v440
        %v443 = vadd.f32 %v429, %v441
        %s444 = sld [smem:[#allocation7 + $0x8]]
        %v445 = vstv %s444
        %v446 = vmul.f32 %v445, %v430
        %v447 = vmul.f32 %v445, %v431
        %450 = vrot.lane.b32.xlu0 %v446, 126
        %v451 = vpop.permute.xlu0 %450
        %452 = vrot.lane.b32.xlu0 %v447, 126
        %v453 = vpop.permute.xlu0 %452
        %v456 = vadd.f32 %v436, %v451
        %v457 = vadd.f32 %v437, %v453
        %460 = vrot.lane.b32.xlu0 %v442, 127
        %v461 = vpop.permute.xlu0 %460
        %462 = vrot.lane.b32.xlu0 %v443, 127
        %v463 = vpop.permute.xlu0 %462
        %v466 = vadd.f32 %v456, %v461
        %v467 = vadd.f32 %v457, %v463
        %s468 = scalar_lea.vmem [#allocation2], 24
        %v469 = vld [vmem:[%s468] sm:$0xff]
        %v470 = vld [vmem:[%s468 + $0x8] sm:$0xff]
        %s471 = sld [smem:[#allocation7 + $0x9]]
        %v472 = vstv %s471
        %v473 = vmul.f32 %v472, %v469
        %v474 = vmul.f32 %v472, %v470
        %v475 = vadd.f32 %v473, 0.0
        %v476 = vadd.f32 %v474, 0.0
        %s477 = sld [smem:[#allocation7 + $0xa]]
        %v478 = vstv %s477
        %v479 = vmul.f32 %v478, %v469
        %v480 = vmul.f32 %v478, %v470
        %v481 = vadd.f32 %v479, 0.0
        %v482 = vadd.f32 %v480, 0.0
        %s483 = sld [smem:[#allocation7 + $0xb]]
        %v484 = vstv %s483
        %v485 = vmul.f32 %v484, %v469
        %v486 = vmul.f32 %v484, %v470
        %489 = vrot.lane.b32.xlu0 %v485, 126
        %v490 = vpop.permute.xlu0 %489
        %491 = vrot.lane.b32.xlu0 %v486, 126
        %v492 = vpop.permute.xlu0 %491
        %v495 = vadd.f32 %v475, %v490
        %v496 = vadd.f32 %v476, %v492
        %v497 = vld [vmem:[%s468 + $0x1] sm:$0xff]
        %v498 = vld [vmem:[%s468 + $0x9] sm:$0xff]
        %s499 = sld [smem:[#allocation7 + $0xc]]
        %v500 = vstv %s499
        %v501 = vmul.f32 %v500, %v497
        %v502 = vmul.f32 %v500, %v498
        %505 = vrot.lane.b32.xlu0 %v501, 1
        %v506 = vpop.permute.xlu0 %505
        %507 = vrot.lane.b32.xlu0 %v502, 1
        %v508 = vpop.permute.xlu0 %507
        %v511 = vadd.f32 %v481, %v506
        %v512 = vadd.f32 %v482, %v508
        %s513 = sld [smem:[#allocation7 + $0xd]]
        %v514 = vstv %s513
        %v515 = vmul.f32 %v514, %v497
        %v516 = vmul.f32 %v514, %v498
        %519 = vrot.lane.b32.xlu0 %v515, 127
        %v520 = vpop.permute.xlu0 %519
        %521 = vrot.lane.b32.xlu0 %v516, 127
        %v522 = vpop.permute.xlu0 %521
        %v525 = vadd.f32 %v495, %v520
        %v526 = vadd.f32 %v496, %v522
        %s527 = sld [smem:[#allocation7 + $0xe]]
        %v528 = vstv %s527
        %v529 = vmul.f32 %v528, %v497
        %v530 = vmul.f32 %v528, %v498
        %533 = vrot.lane.b32.xlu0 %v529, 127
        %v534 = vpop.permute.xlu0 %533
        %535 = vrot.lane.b32.xlu0 %v530, 127
        %v536 = vpop.permute.xlu0 %535
        %v539 = vadd.f32 %v511, %v534
        %v540 = vadd.f32 %v512, %v536
        %v541 = vld [vmem:[%s468 + $0x2] sm:$0xff]
        %v542 = vld [vmem:[%s468 + $0xa] sm:$0xff]
        %s543 = sld [smem:[#allocation7 + $0xf]]
        %v544 = vstv %s543
        %v545 = vmul.f32 %v544, %v541
        %v546 = vmul.f32 %v544, %v542
        %v547 = vadd.f32 %v525, %v545
        %v548 = vadd.f32 %v526, %v546
        %s549 = sld [smem:[#allocation7 + $0x10]]
        %v550 = vstv %s549
        %v551 = vmul.f32 %v550, %v541
        %v552 = vmul.f32 %v550, %v542
        %v553 = vadd.f32 %v539, %v551
        %v554 = vadd.f32 %v540, %v552
        %s555 = sld [smem:[#allocation7 + $0x11]]
        %v556 = vstv %s555
        %v557 = vmul.f32 %v556, %v541
        %v558 = vmul.f32 %v556, %v542
        %561 = vrot.lane.b32.xlu0 %v557, 126
        %v562 = vpop.permute.xlu0 %561
        %563 = vrot.lane.b32.xlu0 %v558, 126
        %v564 = vpop.permute.xlu0 %563
        %v567 = vadd.f32 %v547, %v562
        %v568 = vadd.f32 %v548, %v564
        %571 = vrot.lane.b32.xlu0 %v553, 127
        %v572 = vpop.permute.xlu0 %571
        %573 = vrot.lane.b32.xlu0 %v554, 127
        %v574 = vpop.permute.xlu0 %573
        %v577 = vadd.f32 %v567, %v572
        %v578 = vadd.f32 %v568, %v574
        %s579 = scalar_lea.vmem [#allocation2], 48
        %v580 = vld [vmem:[%s579] sm:$0xff]
        %v581 = vld [vmem:[%s579 + $0x8] sm:$0xff]
        %s582 = sld [smem:[#allocation7 + $0x12]]
        %v583 = vstv %s582
        %v584 = vmul.f32 %v583, %v580
        %v585 = vmul.f32 %v583, %v581
        %v586 = vadd.f32 %v584, 0.0
        %v587 = vadd.f32 %v585, 0.0
        %s588 = sld [smem:[#allocation7 + $0x13]]
        %v589 = vstv %s588
        %v590 = vmul.f32 %v589, %v580
        %v591 = vmul.f32 %v589, %v581
        %v592 = vadd.f32 %v590, 0.0
        %v593 = vadd.f32 %v591, 0.0
        %s594 = sld [smem:[#allocation7 + $0x14]]
        %v595 = vstv %s594
        %v596 = vmul.f32 %v595, %v580
        %v597 = vmul.f32 %v595, %v581
        %600 = vrot.lane.b32.xlu0 %v596, 126
        %v601 = vpop.permute.xlu0 %600
        %602 = vrot.lane.b32.xlu0 %v597, 126
        %v603 = vpop.permute.xlu0 %602
        %v606 = vadd.f32 %v586, %v601
        %v607 = vadd.f32 %v587, %v603
        %v608 = vld [vmem:[%s579 + $0x1] sm:$0xff]
        %v609 = vld [vmem:[%s579 + $0x9] sm:$0xff]
        %s610 = sld [smem:[#allocation7 + $0x15]]
        %v611 = vstv %s610
        %v612 = vmul.f32 %v611, %v608
        %v613 = vmul.f32 %v611, %v609
        %616 = vrot.lane.b32.xlu0 %v612, 1
        %v617 = vpop.permute.xlu0 %616
        %618 = vrot.lane.b32.xlu0 %v613, 1
        %v619 = vpop.permute.xlu0 %618
        %v622 = vadd.f32 %v592, %v617
        %v623 = vadd.f32 %v593, %v619
        %s624 = sld [smem:[#allocation7 + $0x16]]
        %v625 = vstv %s624
        %v626 = vmul.f32 %v625, %v608
        %v627 = vmul.f32 %v625, %v609
        %630 = vrot.lane.b32.xlu0 %v626, 127
        %v631 = vpop.permute.xlu0 %630
        %632 = vrot.lane.b32.xlu0 %v627, 127
        %v633 = vpop.permute.xlu0 %632
        %v636 = vadd.f32 %v606, %v631
        %v637 = vadd.f32 %v607, %v633
        %s638 = sld [smem:[#allocation7 + $0x17]]
        %v639 = vstv %s638
        %v640 = vmul.f32 %v639, %v608
        %v641 = vmul.f32 %v639, %v609
        %644 = vrot.lane.b32.xlu0 %v640, 127
        %v645 = vpop.permute.xlu0 %644
        %646 = vrot.lane.b32.xlu0 %v641, 127
        %v647 = vpop.permute.xlu0 %646
        %v650 = vadd.f32 %v622, %v645
        %v651 = vadd.f32 %v623, %v647
        %v652 = vld [vmem:[%s579 + $0x2] sm:$0xff]
        %v653 = vld [vmem:[%s579 + $0xa] sm:$0xff]
        %s654 = sld [smem:[#allocation7 + $0x18]]
        %v655 = vstv %s654
        %v656 = vmul.f32 %v655, %v652
        %v657 = vmul.f32 %v655, %v653
        %v658 = vadd.f32 %v636, %v656
        %v659 = vadd.f32 %v637, %v657
        %s660 = sld [smem:[#allocation7 + $0x19]]
        %v661 = vstv %s660
        %v662 = vmul.f32 %v661, %v652
        %v663 = vmul.f32 %v661, %v653
        %v664 = vadd.f32 %v650, %v662
        %v665 = vadd.f32 %v651, %v663
        %s666 = sld [smem:[#allocation7 + $0x1a]]
        %v667 = vstv %s666
        %v668 = vmul.f32 %v667, %v652
        %v669 = vmul.f32 %v667, %v653
        %672 = vrot.lane.b32.xlu0 %v668, 126
        %v673 = vpop.permute.xlu0 %672
        %674 = vrot.lane.b32.xlu0 %v669, 126
        %v675 = vpop.permute.xlu0 %674
        %v678 = vadd.f32 %v658, %v673
        %v679 = vadd.f32 %v659, %v675
        %682 = vrot.lane.b32.xlu0 %v664, 127
        %v683 = vpop.permute.xlu0 %682
        %684 = vrot.lane.b32.xlu0 %v665, 127
        %v685 = vpop.permute.xlu0 %684
        %v688 = vadd.f32 %v678, %v683
        %v689 = vadd.f32 %v679, %v685
        %s690 = scalar_lea.vmem [#allocation2], 72
        %v691 = vld [vmem:[%s690] sm:$0xff]
        %v692 = vld [vmem:[%s690 + $0x8] sm:$0xff]
        %s693 = sld [smem:[#allocation7 + $0x1b]]
        %v694 = vstv %s693
        %v695 = vmul.f32 %v694, %v691
        %v696 = vmul.f32 %v694, %v692
        %v697 = vadd.f32 %v695, 0.0
        %v698 = vadd.f32 %v696, 0.0
        %s699 = sld [smem:[#allocation7 + $0x1c]]
        %v700 = vstv %s699
        %v701 = vmul.f32 %v700, %v691
        %v702 = vmul.f32 %v700, %v692
        %v703 = vadd.f32 %v701, 0.0
        %v704 = vadd.f32 %v702, 0.0
        %s705 = sld [smem:[#allocation7 + $0x1d]]
        %v706 = vstv %s705
        %v707 = vmul.f32 %v706, %v691
        %v708 = vmul.f32 %v706, %v692
        %711 = vrot.lane.b32.xlu0 %v707, 126
        %v712 = vpop.permute.xlu0 %711
        %713 = vrot.lane.b32.xlu0 %v708, 126
        %v714 = vpop.permute.xlu0 %713
        %v717 = vadd.f32 %v697, %v712
        %v718 = vadd.f32 %v698, %v714
        %v719 = vld [vmem:[%s690 + $0x1] sm:$0xff]
        %v720 = vld [vmem:[%s690 + $0x9] sm:$0xff]
        %s721 = sld [smem:[#allocation7 + $0x1e]]
        %v722 = vstv %s721
        %v723 = vmul.f32 %v722, %v719
        %v724 = vmul.f32 %v722, %v720
        %727 = vrot.lane.b32.xlu0 %v723, 1
        %v728 = vpop.permute.xlu0 %727
        %729 = vrot.lane.b32.xlu0 %v724, 1
        %v730 = vpop.permute.xlu0 %729
        %v733 = vadd.f32 %v703, %v728
        %v734 = vadd.f32 %v704, %v730
        %s735 = sld [smem:[#allocation7 + $0x1f]]
        %v736 = vstv %s735
        %v737 = vmul.f32 %v736, %v719
        %v738 = vmul.f32 %v736, %v720
        %741 = vrot.lane.b32.xlu0 %v737, 127
        %v742 = vpop.permute.xlu0 %741
        %743 = vrot.lane.b32.xlu0 %v738, 127
        %v744 = vpop.permute.xlu0 %743
        %v747 = vadd.f32 %v717, %v742
        %v748 = vadd.f32 %v718, %v744
        %s749 = sld [smem:[#allocation7 + $0x20]]
        %v750 = vstv %s749
        %v751 = vmul.f32 %v750, %v719
        %v752 = vmul.f32 %v750, %v720
        %755 = vrot.lane.b32.xlu0 %v751, 127
        %v756 = vpop.permute.xlu0 %755
        %757 = vrot.lane.b32.xlu0 %v752, 127
        %v758 = vpop.permute.xlu0 %757
        %v761 = vadd.f32 %v733, %v756
        %v762 = vadd.f32 %v734, %v758
        %v763 = vld [vmem:[%s690 + $0x2] sm:$0xff]
        %v764 = vld [vmem:[%s690 + $0xa] sm:$0xff]
        %s765 = sld [smem:[#allocation7 + $0x21]]
        %v766 = vstv %s765
        %v767 = vmul.f32 %v766, %v763
        %v768 = vmul.f32 %v766, %v764
        %v769 = vadd.f32 %v747, %v767
        %v770 = vadd.f32 %v748, %v768
        %s771 = sld [smem:[#allocation7 + $0x22]]
        %v772 = vstv %s771
        %v773 = vmul.f32 %v772, %v763
        %v774 = vmul.f32 %v772, %v764
        %v775 = vadd.f32 %v761, %v773
        %v776 = vadd.f32 %v762, %v774
        %s777 = sld [smem:[#allocation7 + $0x23]]
        %v778 = vstv %s777
        %v779 = vmul.f32 %v778, %v763
        %v780 = vmul.f32 %v778, %v764
        %783 = vrot.lane.b32.xlu0 %v779, 126
        %v784 = vpop.permute.xlu0 %783
        %785 = vrot.lane.b32.xlu0 %v780, 126
        %v786 = vpop.permute.xlu0 %785
        %v789 = vadd.f32 %v769, %v784
        %v790 = vadd.f32 %v770, %v786
        %793 = vrot.lane.b32.xlu0 %v775, 127
        %v794 = vpop.permute.xlu0 %793
        %795 = vrot.lane.b32.xlu0 %v776, 127
        %v796 = vpop.permute.xlu0 %795
        %v799 = vadd.f32 %v789, %v794
        %v800 = vadd.f32 %v790, %v796
        %s801 = sld [smem:[#allocation8]]
        %v802 = vstv %s801
        %v803 = vmul.f32 %v802, %v466
        %v804 = vmul.f32 %v802, %v467
        %v805 = vadd.f32 %v803, 0.0
        %v806 = vadd.f32 %v804, 0.0
        %s807 = sld [smem:[#allocation8 + $0x1]]
        %v808 = vstv %s807
        %v809 = vmul.f32 %v808, %v577
        %v810 = vmul.f32 %v808, %v578
        %v811 = vadd.f32 %v809, 0.0
        %v812 = vadd.f32 %v810, 0.0
        %s813 = sld [smem:[#allocation8 + $0x2]]
        %v814 = vstv %s813
        %v815 = vmul.f32 %v814, %v688
        %v816 = vmul.f32 %v814, %v689
        %v817 = vadd.f32 %v805, %v815
        %v818 = vadd.f32 %v806, %v816
        %s819 = sld [smem:[#allocation8 + $0x3]]
        %v820 = vstv %s819
        %v821 = vmul.f32 %v820, %v799
        %v822 = vmul.f32 %v820, %v800
        %v823 = vadd.f32 %v811, %v821
        %v824 = vadd.f32 %v812, %v822
        %v825 = vadd.f32 %v817, %v823
        %v826 = vadd.f32 %v818, %v824
        %s827 = sld [smem:[#allocation10]]
        %v828 = vstv %s827
        %v829 = vmul.f32 %v825, %v828
        %v830 = vmul.f32 %v826, %v828
        %s831 = sld [smem:[#allocation11]]
        %v832 = vstv %s831
        %v833 = vadd.f32 %v829, %v832
        %v834 = vadd.f32 %v830, %v832
        %v835 = vxor.u32 %v833, 2147483648
        %v836 = vxor.u32 %v834, 2147483648
        %v837 = vmul.f32 %v835, 1.442695
        %v838 = vpow.pop %v837
        %v839 = vmul.f32 %v836, 1.442695
        %v840 = vpow.pop %v839
        %v841 = vadd.f32 %v838, 1.0
        %v842 = vadd.f32 %v840, 1.0
        %v843 = vrcp.pop %v841
        %v844 = vmul.f32 1.0, %v843
        %v845 = vrcp.pop %v842
        %v846 = vmul.f32 1.0, %v845
        %v847 = vmul.f32 %v833, %v844
        %v848 = vmul.f32 %v834, %v846
        %vm849 = vcmask 130048
        %850 = vst.msk [vmem:[%s294] sm:$0xff] %vm849, %v847
        %851 = vst.msk [vmem:[%s294 + $0x8] sm:$0xff] %vm849, %v848
        %s852 = sld [smem:[#allocation8 + $0x4]]
        %v853 = vstv %s852
        %v854 = vmul.f32 %v853, %v466
        %v855 = vmul.f32 %v853, %v467
        %v856 = vadd.f32 %v854, 0.0
        %v857 = vadd.f32 %v855, 0.0
        %s858 = sld [smem:[#allocation8 + $0x5]]
        %v859 = vstv %s858
        %v860 = vmul.f32 %v859, %v577
        %v861 = vmul.f32 %v859, %v578
        %v862 = vadd.f32 %v860, 0.0
        %v863 = vadd.f32 %v861, 0.0
        %s864 = sld [smem:[#allocation8 + $0x6]]
        %v865 = vstv %s864
        %v866 = vmul.f32 %v865, %v688
        %v867 = vmul.f32 %v865, %v689
        %v868 = vadd.f32 %v856, %v866
        %v869 = vadd.f32 %v857, %v867
        %s870 = sld [smem:[#allocation8 + $0x7]]
        %v871 = vstv %s870
        %v872 = vmul.f32 %v871, %v799
        %v873 = vmul.f32 %v871, %v800
        %v874 = vadd.f32 %v862, %v872
        %v875 = vadd.f32 %v863, %v873
        %v876 = vadd.f32 %v868, %v874
        %v877 = vadd.f32 %v869, %v875
        %s878 = sld [smem:[#allocation10 + $0x1]]
        %v879 = vstv %s878
        %v880 = vmul.f32 %v876, %v879
        %v881 = vmul.f32 %v877, %v879
        %s882 = sld [smem:[#allocation11 + $0x1]]
        %v883 = vstv %s882
        %v884 = vadd.f32 %v880, %v883
        %v885 = vadd.f32 %v881, %v883
        %v886 = vxor.u32 %v884, 2147483648
        %v887 = vxor.u32 %v885, 2147483648
        %v888 = vmul.f32 %v886, 1.442695
        %v889 = vpow.pop %v888
        %v890 = vmul.f32 %v887, 1.442695
        %v891 = vpow.pop %v890
        %v892 = vadd.f32 %v889, 1.0
        %v893 = vadd.f32 %v891, 1.0
        %v894 = vrcp.pop %v892
        %v895 = vmul.f32 1.0, %v894
        %v896 = vrcp.pop %v893
        %v897 = vmul.f32 1.0, %v896
        %v898 = vmul.f32 %v884, %v895
        %v899 = vmul.f32 %v885, %v897
        %s900 = scalar_lea.vmem %s294, 16 [#allocation13]
        %901 = vst.msk [vmem:[%s900] sm:$0xff] %vm849, %v898
        %902 = vst.msk [vmem:[%s900 + $0x8] sm:$0xff] %vm849, %v899
        %s903 = sld [smem:[#allocation8 + $0x8]]
        %v904 = vstv %s903
        %v905 = vmul.f32 %v904, %v466
        %v906 = vmul.f32 %v904, %v467
        %v907 = vadd.f32 %v905, 0.0
        %v908 = vadd.f32 %v906, 0.0
        %s909 = sld [smem:[#allocation8 + $0x9]]
        %v910 = vstv %s909
        %v911 = vmul.f32 %v910, %v577
        %v912 = vmul.f32 %v910, %v578
        %v913 = vadd.f32 %v911, 0.0
        %v914 = vadd.f32 %v912, 0.0
        %s915 = sld [smem:[#allocation8 + $0xa]]
        %v916 = vstv %s915
        %v917 = vmul.f32 %v916, %v688
        %v918 = vmul.f32 %v916, %v689
        %v919 = vadd.f32 %v907, %v917
        %v920 = vadd.f32 %v908, %v918
        %s921 = sld [smem:[#allocation8 + $0xb]]
        %v922 = vstv %s921
        %v923 = vmul.f32 %v922, %v799
        %v924 = vmul.f32 %v922, %v800
        %v925 = vadd.f32 %v913, %v923
        %v926 = vadd.f32 %v914, %v924
        %v927 = vadd.f32 %v919, %v925
        %v928 = vadd.f32 %v920, %v926
        %s929 = sld [smem:[#allocation10 + $0x2]]
        %v930 = vstv %s929
        %v931 = vmul.f32 %v927, %v930
        %v932 = vmul.f32 %v928, %v930
        %s933 = sld [smem:[#allocation11 + $0x2]]
        %v934 = vstv %s933
        %v935 = vadd.f32 %v931, %v934
        %v936 = vadd.f32 %v932, %v934
        %v937 = vxor.u32 %v935, 2147483648
        %v938 = vxor.u32 %v936, 2147483648
        %v939 = vmul.f32 %v937, 1.442695
        %v940 = vpow.pop %v939
        %v941 = vmul.f32 %v938, 1.442695
        %v942 = vpow.pop %v941
        %v943 = vadd.f32 %v940, 1.0
        %v944 = vadd.f32 %v942, 1.0
        %v945 = vrcp.pop %v943
        %v946 = vmul.f32 1.0, %v945
        %v947 = vrcp.pop %v944
        %v948 = vmul.f32 1.0, %v947
        %v949 = vmul.f32 %v935, %v946
        %v950 = vmul.f32 %v936, %v948
        %s951 = scalar_lea.vmem %s294, 32 [#allocation13]
        %952 = vst.msk [vmem:[%s951] sm:$0xff] %vm849, %v949
        %953 = vst.msk [vmem:[%s951 + $0x8] sm:$0xff] %vm849, %v950
        %s954 = sld [smem:[#allocation8 + $0xc]]
        %v955 = vstv %s954
        %v956 = vmul.f32 %v955, %v466
        %v957 = vmul.f32 %v955, %v467
        %v958 = vadd.f32 %v956, 0.0
        %v959 = vadd.f32 %v957, 0.0
        %s960 = sld [smem:[#allocation8 + $0xd]]
        %v961 = vstv %s960
        %v962 = vmul.f32 %v961, %v577
        %v963 = vmul.f32 %v961, %v578
        %v964 = vadd.f32 %v962, 0.0
        %v965 = vadd.f32 %v963, 0.0
        %s966 = sld [smem:[#allocation8 + $0xe]]
        %v967 = vstv %s966
        %v968 = vmul.f32 %v967, %v688
        %v969 = vmul.f32 %v967, %v689
        %v970 = vadd.f32 %v958, %v968
        %v971 = vadd.f32 %v959, %v969
        %s972 = sld [smem:[#allocation8 + $0xf]]
        %v973 = vstv %s972
        %v974 = vmul.f32 %v973, %v799
        %v975 = vmul.f32 %v973, %v800
        %v976 = vadd.f32 %v964, %v974
        %v977 = vadd.f32 %v965, %v975
        %v978 = vadd.f32 %v970, %v976
        %v979 = vadd.f32 %v971, %v977
        %s980 = sld [smem:[#allocation10 + $0x3]]
        %v981 = vstv %s980
        %v982 = vmul.f32 %v978, %v981
        %v983 = vmul.f32 %v979, %v981
        %s984 = sld [smem:[#allocation11 + $0x3]]
        %v985 = vstv %s984
        %v986 = vadd.f32 %v982, %v985
        %v987 = vadd.f32 %v983, %v985
        %v988 = vxor.u32 %v986, 2147483648
        %v989 = vxor.u32 %v987, 2147483648
        %v990 = vmul.f32 %v988, 1.442695
        %v991 = vpow.pop %v990
        %v992 = vmul.f32 %v989, 1.442695
        %v993 = vpow.pop %v992
        %v994 = vadd.f32 %v991, 1.0
        %v995 = vadd.f32 %v993, 1.0
        %v996 = vrcp.pop %v994
        %v997 = vmul.f32 1.0, %v996
        %v998 = vrcp.pop %v995
        %v999 = vmul.f32 1.0, %v998
        %v1000 = vmul.f32 %v986, %v997
        %v1001 = vmul.f32 %v987, %v999
        %s1002 = scalar_lea.vmem %s294, 48 [#allocation13]
        %1003 = vst.msk [vmem:[%s1002] sm:$0xff] %vm849, %v1000
        %1004 = vst.msk [vmem:[%s1002 + $0x8] sm:$0xff] %vm849, %v1001
        %s1005 = sld [smem:[#allocation8 + $0x10]]
        %v1006 = vstv %s1005
        %v1007 = vmul.f32 %v1006, %v466
        %v1008 = vmul.f32 %v1006, %v467
        %v1009 = vadd.f32 %v1007, 0.0
        %v1010 = vadd.f32 %v1008, 0.0
        %s1011 = sld [smem:[#allocation8 + $0x11]]
        %v1012 = vstv %s1011
        %v1013 = vmul.f32 %v1012, %v577
        %v1014 = vmul.f32 %v1012, %v578
        %v1015 = vadd.f32 %v1013, 0.0
        %v1016 = vadd.f32 %v1014, 0.0
        %s1017 = sld [smem:[#allocation8 + $0x12]]
        %v1018 = vstv %s1017
        %v1019 = vmul.f32 %v1018, %v688
        %v1020 = vmul.f32 %v1018, %v689
        %v1021 = vadd.f32 %v1009, %v1019
        %v1022 = vadd.f32 %v1010, %v1020
        %s1023 = sld [smem:[#allocation8 + $0x13]]
        %v1024 = vstv %s1023
        %v1025 = vmul.f32 %v1024, %v799
        %v1026 = vmul.f32 %v1024, %v800
        %v1027 = vadd.f32 %v1015, %v1025
        %v1028 = vadd.f32 %v1016, %v1026
        %v1029 = vadd.f32 %v1021, %v1027
        %v1030 = vadd.f32 %v1022, %v1028
        %s1031 = sld [smem:[#allocation10 + $0x4]]
        %v1032 = vstv %s1031
        %v1033 = vmul.f32 %v1029, %v1032
        %v1034 = vmul.f32 %v1030, %v1032
        %s1035 = sld [smem:[#allocation11 + $0x4]]
        %v1036 = vstv %s1035
        %v1037 = vadd.f32 %v1033, %v1036
        %v1038 = vadd.f32 %v1034, %v1036
        %v1039 = vxor.u32 %v1037, 2147483648
        %v1040 = vxor.u32 %v1038, 2147483648
        %v1041 = vmul.f32 %v1039, 1.442695
        %v1042 = vpow.pop %v1041
        %v1043 = vmul.f32 %v1040, 1.442695
        %v1044 = vpow.pop %v1043
        %v1045 = vadd.f32 %v1042, 1.0
        %v1046 = vadd.f32 %v1044, 1.0
        %v1047 = vrcp.pop %v1045
        %v1048 = vmul.f32 1.0, %v1047
        %v1049 = vrcp.pop %v1046
        %v1050 = vmul.f32 1.0, %v1049
        %v1051 = vmul.f32 %v1037, %v1048
        %v1052 = vmul.f32 %v1038, %v1050
        %s1053 = scalar_lea.vmem %s294, 64 [#allocation13]
        %1054 = vst.msk [vmem:[%s1053] sm:$0xff] %vm849, %v1051
        %1055 = vst.msk [vmem:[%s1053 + $0x8] sm:$0xff] %vm849, %v1052
        %s1056 = sld [smem:[#allocation8 + $0x14]]
        %v1057 = vstv %s1056
        %v1058 = vmul.f32 %v1057, %v466
        %v1059 = vmul.f32 %v1057, %v467
        %v1060 = vadd.f32 %v1058, 0.0
        %v1061 = vadd.f32 %v1059, 0.0
        %s1062 = sld [smem:[#allocation8 + $0x15]]
        %v1063 = vstv %s1062
        %v1064 = vmul.f32 %v1063, %v577
        %v1065 = vmul.f32 %v1063, %v578
        %v1066 = vadd.f32 %v1064, 0.0
        %v1067 = vadd.f32 %v1065, 0.0
        %s1068 = sld [smem:[#allocation8 + $0x16]]
        %v1069 = vstv %s1068
        %v1070 = vmul.f32 %v1069, %v688
        %v1071 = vmul.f32 %v1069, %v689
        %v1072 = vadd.f32 %v1060, %v1070
        %v1073 = vadd.f32 %v1061, %v1071
        %s1074 = sld [smem:[#allocation8 + $0x17]]
        %v1075 = vstv %s1074
        %v1076 = vmul.f32 %v1075, %v799
        %v1077 = vmul.f32 %v1075, %v800
        %v1078 = vadd.f32 %v1066, %v1076
        %v1079 = vadd.f32 %v1067, %v1077
        %v1080 = vadd.f32 %v1072, %v1078
        %v1081 = vadd.f32 %v1073, %v1079
        %s1082 = sld [smem:[#allocation10 + $0x5]]
        %v1083 = vstv %s1082
        %v1084 = vmul.f32 %v1080, %v1083
        %v1085 = vmul.f32 %v1081, %v1083
        %s1086 = sld [smem:[#allocation11 + $0x5]]
        %v1087 = vstv %s1086
        %v1088 = vadd.f32 %v1084, %v1087
        %v1089 = vadd.f32 %v1085, %v1087
        %v1090 = vxor.u32 %v1088, 2147483648
        %v1091 = vxor.u32 %v1089, 2147483648
        %v1092 = vmul.f32 %v1090, 1.442695
        %v1093 = vpow.pop %v1092
        %v1094 = vmul.f32 %v1091, 1.442695
        %v1095 = vpow.pop %v1094
        %v1096 = vadd.f32 %v1093, 1.0
        %v1097 = vadd.f32 %v1095, 1.0
        %v1098 = vrcp.pop %v1096
        %v1099 = vmul.f32 1.0, %v1098
        %v1100 = vrcp.pop %v1097
        %v1101 = vmul.f32 1.0, %v1100
        %v1102 = vmul.f32 %v1088, %v1099
        %v1103 = vmul.f32 %v1089, %v1101
        %s1104 = scalar_lea.vmem %s294, 80 [#allocation13]
        %1105 = vst.msk [vmem:[%s1104] sm:$0xff] %vm849, %v1102
        %1106 = vst.msk [vmem:[%s1104 + $0x8] sm:$0xff] %vm849, %v1103
        %s1107 = sld [smem:[#allocation8 + $0x18]]
        %v1108 = vstv %s1107
        %v1109 = vmul.f32 %v1108, %v466
        %v1110 = vmul.f32 %v1108, %v467
        %v1111 = vadd.f32 %v1109, 0.0
        %v1112 = vadd.f32 %v1110, 0.0
        %s1113 = sld [smem:[#allocation8 + $0x19]]
        %v1114 = vstv %s1113
        %v1115 = vmul.f32 %v1114, %v577
        %v1116 = vmul.f32 %v1114, %v578
        %v1117 = vadd.f32 %v1115, 0.0
        %v1118 = vadd.f32 %v1116, 0.0
        %s1119 = sld [smem:[#allocation8 + $0x1a]]
        %v1120 = vstv %s1119
        %v1121 = vmul.f32 %v1120, %v688
        %v1122 = vmul.f32 %v1120, %v689
        %v1123 = vadd.f32 %v1111, %v1121
        %v1124 = vadd.f32 %v1112, %v1122
        %s1125 = sld [smem:[#allocation8 + $0x1b]]
        %v1126 = vstv %s1125
        %v1127 = vmul.f32 %v1126, %v799
        %v1128 = vmul.f32 %v1126, %v800
        %v1129 = vadd.f32 %v1117, %v1127
        %v1130 = vadd.f32 %v1118, %v1128
        %v1131 = vadd.f32 %v1123, %v1129
        %v1132 = vadd.f32 %v1124, %v1130
        %s1133 = sld [smem:[#allocation10 + $0x6]]
        %v1134 = vstv %s1133
        %v1135 = vmul.f32 %v1131, %v1134
        %v1136 = vmul.f32 %v1132, %v1134
        %s1137 = sld [smem:[#allocation11 + $0x6]]
        %v1138 = vstv %s1137
        %v1139 = vadd.f32 %v1135, %v1138
        %v1140 = vadd.f32 %v1136, %v1138
        %v1141 = vxor.u32 %v1139, 2147483648
        %v1142 = vxor.u32 %v1140, 2147483648
        %v1143 = vmul.f32 %v1141, 1.442695
        %v1144 = vpow.pop %v1143
        %v1145 = vmul.f32 %v1142, 1.442695
        %v1146 = vpow.pop %v1145
        %v1147 = vadd.f32 %v1144, 1.0
        %v1148 = vadd.f32 %v1146, 1.0
        %v1149 = vrcp.pop %v1147
        %v1150 = vmul.f32 1.0, %v1149
        %v1151 = vrcp.pop %v1148
        %v1152 = vmul.f32 1.0, %v1151
        %v1153 = vmul.f32 %v1139, %v1150
        %v1154 = vmul.f32 %v1140, %v1152
        %s1155 = scalar_lea.vmem %s294, 96 [#allocation13]
        %1156 = vst.msk [vmem:[%s1155] sm:$0xff] %vm849, %v1153
        %1157 = vst.msk [vmem:[%s1155 + $0x8] sm:$0xff] %vm849, %v1154
        %s1158 = sld [smem:[#allocation8 + $0x1c]]
        %v1159 = vstv %s1158
        %v1160 = vmul.f32 %v1159, %v466
        %v1161 = vmul.f32 %v1159, %v467
        %v1162 = vadd.f32 %v1160, 0.0
        %v1163 = vadd.f32 %v1161, 0.0
        %s1164 = sld [smem:[#allocation8 + $0x1d]]
        %v1165 = vstv %s1164
        %v1166 = vmul.f32 %v1165, %v577
        %v1167 = vmul.f32 %v1165, %v578
        %v1168 = vadd.f32 %v1166, 0.0
        %v1169 = vadd.f32 %v1167, 0.0
        %s1170 = sld [smem:[#allocation8 + $0x1e]]
        %v1171 = vstv %s1170
        %v1172 = vmul.f32 %v1171, %v688
        %v1173 = vmul.f32 %v1171, %v689
        %v1174 = vadd.f32 %v1162, %v1172
        %v1175 = vadd.f32 %v1163, %v1173
        %s1176 = sld [smem:[#allocation8 + $0x1f]]
        %v1177 = vstv %s1176
        %v1178 = vmul.f32 %v1177, %v799
        %v1179 = vmul.f32 %v1177, %v800
        %v1180 = vadd.f32 %v1168, %v1178
        %v1181 = vadd.f32 %v1169, %v1179
        %v1182 = vadd.f32 %v1174, %v1180
        %v1183 = vadd.f32 %v1175, %v1181
        %s1184 = sld [smem:[#allocation10 + $0x7]]
        %v1185 = vstv %s1184
        %v1186 = vmul.f32 %v1182, %v1185
        %v1187 = vmul.f32 %v1183, %v1185
        %s1188 = sld [smem:[#allocation11 + $0x7]]
        %v1189 = vstv %s1188
        %v1190 = vadd.f32 %v1186, %v1189
        %v1191 = vadd.f32 %v1187, %v1189
        %v1192 = vxor.u32 %v1190, 2147483648
        %v1193 = vxor.u32 %v1191, 2147483648
        %v1194 = vmul.f32 %v1192, 1.442695
        %v1195 = vpow.pop %v1194
        %v1196 = vmul.f32 %v1193, 1.442695
        %v1197 = vpow.pop %v1196
        %v1198 = vadd.f32 %v1195, 1.0
        %v1199 = vadd.f32 %v1197, 1.0
        %v1200 = vrcp.pop %v1198
        %v1201 = vmul.f32 1.0, %v1200
        %v1202 = vrcp.pop %v1199
        %v1203 = vmul.f32 1.0, %v1202
        %v1204 = vmul.f32 %v1190, %v1201
        %v1205 = vmul.f32 %v1191, %v1203
        %s1206 = scalar_lea.vmem %s294, 112 [#allocation13]
        %1207 = vst.msk [vmem:[%s1206] sm:$0xff] %vm849, %v1204
        %1208 = vst.msk [vmem:[%s1206 + $0x8] sm:$0xff] %vm849, %v1205
        %s1209 = sand.u32 %s143, 1
        %s1210 = scalar_lea.sflag [#allocation5], %s1209
        %s1211 = sand.u32 %s143, 1
        %s1212 = smul.addr %s1211, 128
        %s1213 = scalar_lea.vmem [#allocation13], %s1212
        // Predicated region
        $region61: #{dwsep_forward.1} parent=39 // pred_check
          %p1214 = pneg %p153
        $region62: #{dwsep_forward.1} parent=39 // pred_check_branch
          %1216 = sbr.rel (%p1214) target = $region64
        $region63: #{dwsep_forward.1} parent=39 // pred_region
          %s1218 = ssub.s32 2048, 2048
          %1219 = vsyncadd %s1210, %s1218
          %s1220 = smul.addr %s25, 16
          %s1221 = smul.addr %s1220, 128
          %s1222 = scalar_lea.hbm %s5, %s1221
          %s1223 = sshll.u32 %s1213, 4
          %s1224 = int_to_ptr.vmem [resolvable:$true] %s1223
          %1229 = dma.vmem_to_hbm [thread:$0]  %s1224, 2048, %s1222, %s1210, 128, 128, 8
        $region64: #{dwsep_forward.1} parent=39 // pred_fallthru
          _
      $region40: #{dwsep_forward.1} parent=5 // pred_fallthru
        _
      %p1230 = scmp.le.s32.totalorder 2, %s20
      // Predicated region
      $region65: #{dwsep_forward.1} parent=5 // pred_check
        %p1231 = pneg %p1230
      $region66: #{dwsep_forward.1} parent=5 // pred_check_branch
        %1233 = sbr.rel (%p1231) target = $region68
      $region67: #{dwsep_forward.1} parent=5 // pred_region
        %s1234 = ssub.s32 %s20, 2
        // Predicated region
        $region69: #{dwsep_forward.1} parent=67 // pred_check
          %p1235 = pneg %p159
        $region70: #{dwsep_forward.1} parent=67 // pred_check_branch
          %1237 = sbr.rel (%p1235) target = $region72
        $region71: #{dwsep_forward.1} parent=67 // pred_region
          %s1238 = sand.u32 %s144, 1
          %s1239 = scalar_lea.sflag [#allocation5], %s1238
          %s1240 = sand.u32 %s144, 1
          %s1241 = smul.addr %s1240, 128
          %s1242 = scalar_lea.vmem [#allocation13], %s1241
          %1243 = dma.done %s1239, 2048
        $region72: #{dwsep_forward.1} parent=67 // pred_fallthru
          _
      $region68: #{dwsep_forward.1} parent=5 // pred_fallthru
        _
    $region6: #{dwsep_forward.1} parent=1 // loop_footer
      %s24 = sadd.s32 1, %s20
    $region7: #{dwsep_forward.1} parent=1 // loop_footer_branch
      %19 = sbr.rel target = $region3
    $region8: #{dwsep_forward.1} parent=1 // loop_exit
      _
    %1244 = vsyncpa [#allocation4], 1
    %s1245 = scalar_lea.sflag [#allocation4], 1
    %1246 = vsyncpa %s1245, 1
    %1247 = vsyncpa [#allocation5], 1
    %s1248 = scalar_lea.sflag [#allocation5], 1
    %1249 = vsyncpa %s1248, 1
    %1250 = vsyncpa [#allocation6], 1
    %s1251 = scalar_lea.sflag [#allocation6], 1
    %1252 = vsyncpa %s1251, 1
    %1253 = vsyncpa [#allocation9], 1
    %1254 = vsyncpa [#allocation12], 1

</llo_original>
